<compile_context>
chip_gen: v7x
topology: tpu7x:2x2x1
jax: 0.10.0
libtpu: 0.0.40
codegen_flags: <defaults>
</compile_context>

<pallas_src>
import functools
import numpy as np
import jax
import jax.numpy as jnp
from jax.experimental import pallas as pl
from jax.experimental.pallas import tpu as pltpu

NEG_INF = float(np.finfo(np.float32).min)
EPS = 1e-6


def _normalize(x, gain, bias):
    # Matches Normalize.forward: mean, unbiased var, sigma = sqrt(var+eps), /(sigma+eps)
    # Divide replaced by (exact) reciprocal + multiply, gain folded into the scale.
    H = x.shape[-1]
    mu = jnp.mean(x, axis=-1, keepdims=True)
    var = jnp.sum((x - mu) ** 2, axis=-1, keepdims=True) / (H - 1)
    inv = pl.reciprocal(jnp.sqrt(var + EPS) + EPS, approx=False)
    return (x - mu) * (gain * inv) + bias


def transformer_layer_kernel(num_heads,
                             hv_ref, he_ref, ma_ref, mv_ref, sel_ref,
                             wq_ref, wk_ref, wv_ref, wo_ref,
                             g1_ref, b1_ref, g2_ref, b2_ref,
                             win_ref, bin_ref, wout_ref, bout_ref,
                             out_ref):
    T, H = hv_ref.shape          # nodes-per-tile, hidden
    TK, C = he_ref.shape         # T*K flattened neighbors, input channels
    K = TK // T
    d = H // num_heads
    mxu_dtype = wq_ref.dtype     # bf16 (or f32) operands for the MXU
    f32 = jnp.float32

    hv = hv_ref[...].astype(f32)             # (T, H)   f32 residual path
    he = he_ref[...].astype(mxu_dtype)       # (T*K, C) cast in VMEM (no HBM cast pass)
    mask = ma_ref[...].astype(f32)[:, :, None]   # (T, K, 1)

    # ---- Projections (MXU, f32 accumulation).  K and V kept separate: with H < 128
    # a fused (C, 2H) projection would need a mid-tile lane slice (relayout copies). ----
    Q = jnp.dot(hv.astype(mxu_dtype), wq_ref[...], preferred_element_type=f32)   # (T, H)
    Kp = jnp.dot(he, wk_ref[...], preferred_element_type=f32)                    # (T*K, H)
    Vp = jnp.dot(he, wv_ref[...], preferred_element_type=f32)                    # (T*K, H)

    # ---- Attention logits, broadcast to every lane of each head in one shot. ----
    # sel[j', j] = 1 iff head(j') == head(j)  (block-diagonal ones matrix, built in the
    # wrapper).  qk @ sel gives logits_full[t,k,j] = sum_{j' in head(j)} Q[t,j']*K[t,k,j'],
    # i.e. each head's logit replicated across its d lanes -> the whole softmax stays
    # H lanes wide instead of num_heads lanes wide.
    qk = (Q[:, None, :] * Kp.reshape(T, K, H)).reshape(TK, H)                    # (T*K, H)
    logits = jnp.dot(qk.astype(mxu_dtype), sel_ref[...],
                     preferred_element_type=f32).reshape(T, K, H)
    logits = logits * (1.0 / np.sqrt(d))

    logits = jnp.where(mask > 0, logits, NEG_INF)
    m = jnp.max(logits, axis=1, keepdims=True)       # (T, 1, H)
    e = jnp.exp(logits - m)                          # (T, K, H)
    s = jnp.sum(e, axis=1, keepdims=True)            # (T, 1, H)
    att = (mask * e) * pl.reciprocal(s, approx=True)  # fused masked-softmax epilogue

    # ---- Context: per-head weighted sum of V (att already head-broadcast over lanes). ----
    ctx = jnp.sum(att * Vp.reshape(T, K, H), axis=1)                             # (T, H)
    dh = jnp.dot(ctx.astype(mxu_dtype), wo_ref[...], preferred_element_type=f32)

    # ---- residual + norm 0   (dropout = identity in eval mode) ----
    x = _normalize(hv + dh, g1_ref[...], b1_ref[...])

    # ---- Position-wise feed-forward ----
    hff = jnp.maximum(
        jnp.dot(x.astype(mxu_dtype), win_ref[...],
                preferred_element_type=f32) + bin_ref[...], 0.0)
    dh2 = jnp.dot(hff.astype(mxu_dtype), wout_ref[...],
                  preferred_element_type=f32) + bout_ref[...]

    # ---- residual + norm 1, node mask ----
    x = _normalize(x + dh2, g2_ref[...], b2_ref[...])
    out_ref[...] = (mv_ref[...].astype(f32) * x).astype(out_ref.dtype)


def transformer_layer(h_V, h_E, mask_V, mask_attend, p, num_heads=4, tile=512,
                      mxu_dtype=jnp.bfloat16, out_dtype=jnp.float32,
                      vmem_limit_mb=None):
    B, N, H = h_V.shape
    K, C = h_E.shape[2], h_E.shape[3]
    F = p["win"].shape[1]
    assert H % num_heads == 0
    d = H // num_heads

    M = B * N
    # Clamp the node tile to the (8-rounded) node count: no HBM padding pass; any
    # ragged last block is masked by Pallas on writeback (all math is row-local).
    tile = min(tile, pl.cdiv(M, 8) * 8)
    assert tile % 8 == 0
    grid = pl.cdiv(M, tile)

    if vmem_limit_mb is None:
        # v7x-safe default (64 MiB physical per TC); sweep up to ~96 on v5e/v6e with tile=1024.
        vmem_limit_mb = 48 if tile <= 512 else 96

    # Zero-copy reshapes only - no jnp.pad, no astype passes over HBM.
    hv = h_V.reshape(M, H)
    he = h_E.reshape(M * K, C)
    ma = mask_attend.reshape(M, K)
    mv = mask_V.reshape(M, 1)

    # Block-diagonal head selector, built once on the host (0/1 -> exact in bf16).
    lane = np.arange(H)
    sel = jnp.asarray((lane[:, None] // d == lane[None, :] // d), dtype=mxu_dtype)

    wq = p["wq"].astype(mxu_dtype)
    wk = p["wk"].astype(mxu_dtype)
    wv = p["wv"].astype(mxu_dtype)
    wo = p["wo"].astype(mxu_dtype)
    win = p["win"].astype(mxu_dtype)
    wout = p["wout"].astype(mxu_dtype)

    full = lambda shape: pl.BlockSpec(shape, lambda i: (0,) * len(shape))
    kernel = functools.partial(transformer_layer_kernel, num_heads)

    out = pl.pallas_call(
        kernel,
        out_shape=jax.ShapeDtypeStruct((M, H), out_dtype),
        grid_spec=pltpu.PrefetchScalarGridSpec(
            num_scalar_prefetch=0,
            grid=(grid,),
            in_specs=[
                pl.BlockSpec((tile, H), lambda i: (i, 0)),        # h_V tile
                # TODO(synk): if profiling shows exposed DMA on this stream at large
                # tiles, add pipeline_mode=pl.Buffered(3) here.
                pl.BlockSpec((tile * K, C), lambda i: (i, 0)),    # h_E tile, pre-flattened
                pl.BlockSpec((tile, K), lambda i: (i, 0)),        # mask_attend tile
                pl.BlockSpec((tile, 1), lambda i: (i, 0)),        # mask_V tile
                full((H, H)),                                     # head selector
                full((H, H)), full((C, H)), full((C, H)), full((H, H)),   # W_Q W_K W_V W_O
                full((1, H)), full((1, H)),                       # norm0 gain, bias
                full((1, H)), full((1, H)),                       # norm1 gain, bias
                full((H, F)), full((1, F)),                       # W_in, b_in
                full((F, H)), full((1, H)),                       # W_out, b_out
            ],
            out_specs=pl.BlockSpec((tile, H), lambda i: (i, 0)),
        ),
        compiler_params=pltpu.CompilerParams(
            dimension_semantics=("parallel",),   # lets the grid shard across TCs (v7x)
            vmem_limit_bytes=vmem_limit_mb * 1024 * 1024,
        ),
    )(hv, he, ma, mv, sel,
      wq, wk, wv, wo,
      p["g1"].reshape(1, H).astype(jnp.float32), p["b1"].reshape(1, H).astype(jnp.float32),
      p["g2"].reshape(1, H).astype(jnp.float32), p["b2"].reshape(1, H).astype(jnp.float32),
      win, p["bin"].reshape(1, F).astype(jnp.float32),
      wout, p["bout"].reshape(1, H).astype(jnp.float32))

    return out.reshape(B, N, H)


def ref_forward(h_V, h_E, mask_V, mask_attend, p, num_heads=4, mxu_dtype=jnp.float32):
    """Pure-JAX reference mirroring the PyTorch forward (eval mode).

    mxu_dtype controls the operand precision of the linear layers so the bf16
    kernel can be checked against an apples-to-apples reference (f32 accumulation,
    f32 softmax/normalize in both)."""
    B, N, H = h_V.shape
    K = h_E.shape[2]
    C = h_E.shape[3]
    F = p["win"].shape[1]
    d = H // num_heads
    f32 = jnp.float32

    def mm(a, w):
        return jnp.dot(a.astype(mxu_dtype), w.astype(mxu_dtype),
                       preferred_element_type=f32)

    Q = mm(h_V.reshape(-1, H), p["wq"]).reshape(B, N, H)
    Kp = mm(h_E.reshape(-1, C), p["wk"]).reshape(B, N, K, H)
    Vp = mm(h_E.reshape(-1, C), p["wv"]).reshape(B, N, K, H)
    Qh = Q.reshape(B, N, num_heads, d)
    Kh = Kp.reshape(B, N, K, num_heads, d)
    Vh = Vp.reshape(B, N, K, num_heads, d)

    logits = jnp.einsum("bnhd,bnkhd->bnhk", Qh, Kh) / np.sqrt(d)
    mask = mask_attend[:, :, None, :]
    logits = jnp.where(mask > 0, logits, NEG_INF)
    att = jax.nn.softmax(logits, axis=-1)
    att = mask * att
    upd = jnp.einsum("bnhk,bnkhd->bnhd", att, Vh).reshape(B, N, H)
    dh = mm(upd.reshape(-1, H), p["wo"]).reshape(B, N, H)

    def norm(x, g, b):
        mu = x.mean(-1, keepdims=True)
        var = jnp.sum((x - mu) ** 2, -1, keepdims=True) / (x.shape[-1] - 1)
        sigma = jnp.sqrt(var + EPS)
        return g * (x - mu) / (sigma + EPS) + b

    x = norm(h_V + dh, p["g1"], p["b1"])
    hff = jax.nn.relu(mm(x.reshape(-1, H), p["win"]).reshape(B, N, F) + p["bin"])
    dh2 = mm(hff.reshape(-1, F), p["wout"]).reshape(B, N, H) + p["bout"]
    x = norm(x + dh2, p["g2"], p["b2"])
    return mask_V[..., None] * x


if __name__ == "__main__":
    B, N, K = 2, 8, 8
    H = 32          # num_hidden
    C = 32          # num_in
    HEADS = 4
    F = 4 * H       # num_ff

    key = jax.random.PRNGKey(0)
    k = jax.random.split(key, 12)

    h_V = jax.random.normal(k[0], (B, N, H), jnp.float32)
    h_E = jax.random.normal(k[1], (B, N, K, C), jnp.float32)
    mask_attend = jax.random.bernoulli(k[2], 0.8, (B, N, K)).astype(jnp.float32)
    mask_V = jax.random.bernoulli(k[3], 0.9, (B, N)).astype(jnp.float32)

    wkey = jax.random.split(jax.random.PRNGKey(42), 8)
    scale = 0.1
    params = {
        "wq": scale * jax.random.normal(wkey[0], (H, H), jnp.float32),
        "wk": scale * jax.random.normal(wkey[1], (C, H), jnp.float32),
        "wv": scale * jax.random.normal(wkey[2], (C, H), jnp.float32),
        "wo": scale * jax.random.normal(wkey[3], (H, H), jnp.float32),
        "g1": jnp.ones((H,), jnp.float32),
        "b1": jnp.zeros((H,), jnp.float32),
        "g2": jnp.ones((H,), jnp.float32),
        "b2": jnp.zeros((H,), jnp.float32),
        "win": scale * jax.random.normal(wkey[4], (H, F), jnp.float32),
        "bin": scale * jax.random.normal(wkey[5], (F,), jnp.float32),
        "wout": scale * jax.random.normal(wkey[6], (F, H), jnp.float32),
        "bout": scale * jax.random.normal(wkey[7], (H,), jnp.float32),
    }

    # f32 operand path: semantics check against the exact f32 reference
    # (only deviation is the approx EUP reciprocal in the softmax denominator).
    out_f32 = jax.block_until_ready(
        transformer_layer(h_V, h_E, mask_V, mask_attend, params,
                          num_heads=HEADS, tile=512,
                          mxu_dtype=jnp.float32, out_dtype=jnp.float32))
    ref_f32 = jax.block_until_ready(
        ref_forward(h_V, h_E, mask_V, mask_attend, params, HEADS, mxu_dtype=jnp.float32))
    np.testing.assert_allclose(np.asarray(out_f32), np.asarray(ref_f32),
                               rtol=2e-3, atol=2e-3)

    # bf16 operand path (production config): bf16 MXU operands, bf16 output,
    # f32 accumulation / softmax / normalize; checked against a bf16-operand reference.
    out_bf16 = jax.block_until_ready(
        transformer_layer(h_V, h_E, mask_V, mask_attend, params,
                          num_heads=HEADS, tile=512,
                          mxu_dtype=jnp.bfloat16, out_dtype=jnp.bfloat16))
    ref_bf16 = jax.block_until_ready(
        ref_forward(h_V, h_E, mask_V, mask_attend, params, HEADS, mxu_dtype=jnp.bfloat16))
    np.testing.assert_allclose(np.asarray(out_bf16.astype(jnp.float32)),
                               np.asarray(ref_bf16),
                               rtol=2e-2, atol=2e-2)

    print("KERNEL_OK")
</pallas_src>

<mosaic_0001>
module attributes {stable_mosaic.version = 11 : i64} {
  func.func @transformer_layer_kernel(%arg0: i32, %arg1: memref<16x32xf32, #tpu.memory_space<vmem>>, %arg2: memref<128x32xf32, #tpu.memory_space<vmem>>, %arg3: memref<16x8xf32, #tpu.memory_space<vmem>>, %arg4: memref<16x1xf32, #tpu.memory_space<vmem>>, %arg5: memref<32x32xf32, #tpu.memory_space<vmem>>, %arg6: memref<32x32xf32, #tpu.memory_space<vmem>>, %arg7: memref<32x32xf32, #tpu.memory_space<vmem>>, %arg8: memref<32x32xf32, #tpu.memory_space<vmem>>, %arg9: memref<32x32xf32, #tpu.memory_space<vmem>>, %arg10: memref<1x32xf32, #tpu.memory_space<vmem>>, %arg11: memref<1x32xf32, #tpu.memory_space<vmem>>, %arg12: memref<1x32xf32, #tpu.memory_space<vmem>>, %arg13: memref<1x32xf32, #tpu.memory_space<vmem>>, %arg14: memref<32x128xf32, #tpu.memory_space<vmem>>, %arg15: memref<1x128xf32, #tpu.memory_space<vmem>>, %arg16: memref<128x32xf32, #tpu.memory_space<vmem>>, %arg17: memref<1x32xf32, #tpu.memory_space<vmem>>, %arg18: memref<16x32xf32, #tpu.memory_space<vmem>>) attributes {dimension_semantics = [#tpu.dimension_semantics<parallel>], iteration_bounds = array<i64: 1>, scalar_prefetch = 0 : i64, scratch_operands = 0 : i64, tpu.core_type = #tpu.core_type<tc>, window_params = [{transform_indices = @transform_0, window_bounds = array<i64: 16, 32>}, {transform_indices = @transform_1, window_bounds = array<i64: 128, 32>}, {transform_indices = @transform_2, window_bounds = array<i64: 16, 8>}, {transform_indices = @transform_3, window_bounds = array<i64: 16, 1>}, {pipeline_mode = #tpu.pipeline_mode<synchronous>, transform_indices = @transform_4, window_bounds = array<i64: 32, 32>}, {pipeline_mode = #tpu.pipeline_mode<synchronous>, transform_indices = @transform_5, window_bounds = array<i64: 32, 32>}, {pipeline_mode = #tpu.pipeline_mode<synchronous>, transform_indices = @transform_6, window_bounds = array<i64: 32, 32>}, {pipeline_mode = #tpu.pipeline_mode<synchronous>, transform_indices = @transform_7, window_bounds = array<i64: 32, 32>}, {pipeline_mode = #tpu.pipeline_mode<synchronous>, transform_indices = @transform_8, window_bounds = array<i64: 32, 32>}, {pipeline_mode = #tpu.pipeline_mode<synchronous>, transform_indices = @transform_9, window_bounds = array<i64: 1, 32>}, {pipeline_mode = #tpu.pipeline_mode<synchronous>, transform_indices = @transform_10, window_bounds = array<i64: 1, 32>}, {pipeline_mode = #tpu.pipeline_mode<synchronous>, transform_indices = @transform_11, window_bounds = array<i64: 1, 32>}, {pipeline_mode = #tpu.pipeline_mode<synchronous>, transform_indices = @transform_12, window_bounds = array<i64: 1, 32>}, {pipeline_mode = #tpu.pipeline_mode<synchronous>, transform_indices = @transform_13, window_bounds = array<i64: 32, 128>}, {pipeline_mode = #tpu.pipeline_mode<synchronous>, transform_indices = @transform_14, window_bounds = array<i64: 1, 128>}, {pipeline_mode = #tpu.pipeline_mode<synchronous>, transform_indices = @transform_15, window_bounds = array<i64: 128, 32>}, {pipeline_mode = #tpu.pipeline_mode<synchronous>, transform_indices = @transform_16, window_bounds = array<i64: 1, 32>}, {transform_indices = @transform_17, window_bounds = array<i64: 16, 32>}]} {
    %c0 = arith.constant 0 : index
    %c0_0 = arith.constant 0 : index
    %0 = vector.load %arg1[%c0, %c0_0] : memref<16x32xf32, #tpu.memory_space<vmem>>, vector<16x32xf32>
    %c0_1 = arith.constant 0 : index
    %c0_2 = arith.constant 0 : index
    %1 = vector.load %arg2[%c0_1, %c0_2] : memref<128x32xf32, #tpu.memory_space<vmem>>, vector<128x32xf32>
    %c0_3 = arith.constant 0 : index
    %c0_4 = arith.constant 0 : index
    %2 = vector.load %arg3[%c0_3, %c0_4] : memref<16x8xf32, #tpu.memory_space<vmem>>, vector<16x8xf32>
    %3 = vector.shape_cast %2 : vector<16x8xf32> to vector<16x8x1xf32>
    %c0_5 = arith.constant 0 : index
    %c0_6 = arith.constant 0 : index
    %4 = vector.load %arg6[%c0_5, %c0_6] : memref<32x32xf32, #tpu.memory_space<vmem>>, vector<32x32xf32>
    %cst = arith.constant dense<0.000000e+00> : vector<16x32xf32>
    %5 = tpu.matmul %0, %4, %cst {dimension_numbers = #tpu.dot_dimension_numbers<[1], [0], [0], [1], [0, 0, 1, 1], [], []>} : vector<16x32xf32>, vector<32x32xf32>, vector<16x32xf32> -> vector<16x32xf32>
    %c0_7 = arith.constant 0 : index
    %c0_8 = arith.constant 0 : index
    %6 = vector.load %arg7[%c0_7, %c0_8] : memref<32x32xf32, #tpu.memory_space<vmem>>, vector<32x32xf32>
    %cst_9 = arith.constant dense<0.000000e+00> : vector<128x32xf32>
    %7 = tpu.matmul %1, %6, %cst_9 {dimension_numbers = #tpu.dot_dimension_numbers<[1], [0], [0], [1], [0, 0, 1, 1], [], []>} : vector<128x32xf32>, vector<32x32xf32>, vector<128x32xf32> -> vector<128x32xf32>
    %c0_10 = arith.constant 0 : index
    %c0_11 = arith.constant 0 : index
    %8 = vector.load %arg8[%c0_10, %c0_11] : memref<32x32xf32, #tpu.memory_space<vmem>>, vector<32x32xf32>
    %cst_12 = arith.constant dense<0.000000e+00> : vector<128x32xf32>
    %9 = tpu.matmul %1, %8, %cst_12 {dimension_numbers = #tpu.dot_dimension_numbers<[1], [0], [0], [1], [0, 0, 1, 1], [], []>} : vector<128x32xf32>, vector<32x32xf32>, vector<128x32xf32> -> vector<128x32xf32>
    %10 = vector.shape_cast %5 : vector<16x32xf32> to vector<16x1x32xf32>
    %11 = vector.shape_cast %7 : vector<128x32xf32> to vector<16x8x32xf32>
    %12 = vector.broadcast %10 : vector<16x1x32xf32> to vector<16x8x32xf32>
    %13 = arith.mulf %12, %11 : vector<16x8x32xf32>
    %14 = vector.shape_cast %13 : vector<16x8x32xf32> to vector<128x32xf32>
    %c0_13 = arith.constant 0 : index
    %c0_14 = arith.constant 0 : index
    %15 = vector.load %arg5[%c0_13, %c0_14] : memref<32x32xf32, #tpu.memory_space<vmem>>, vector<32x32xf32>
    %cst_15 = arith.constant dense<0.000000e+00> : vector<128x32xf32>
    %16 = tpu.matmul %14, %15, %cst_15 {dimension_numbers = #tpu.dot_dimension_numbers<[1], [0], [0], [1], [0, 0, 1, 1], [], []>} : vector<128x32xf32>, vector<32x32xf32>, vector<128x32xf32> -> vector<128x32xf32>
    %17 = vector.shape_cast %16 : vector<128x32xf32> to vector<16x8x32xf32>
    %cst_16 = arith.constant 0.353553385 : f32
    %18 = vector.broadcast %cst_16 : f32 to vector<16x8x32xf32>
    %19 = arith.mulf %17, %18 : vector<16x8x32xf32>
    %cst_17 = arith.constant 0.000000e+00 : f32
    %20 = vector.broadcast %cst_17 : f32 to vector<16x8x1xf32>
    %21 = arith.cmpf ogt, %3, %20 : vector<16x8x1xf32>
    %cst_18 = arith.constant -3.40282347E+38 : f32
    %22 = vector.shape_cast %21 : vector<16x8x1xi1> to vector<16x8x1xi1>
    %23 = vector.broadcast %22 : vector<16x8x1xi1> to vector<16x8x32xi1>
    %24 = vector.broadcast %cst_18 : f32 to vector<16x8x32xf32>
    %25 = arith.select %23, %19, %24 : vector<16x8x32xi1>, vector<16x8x32xf32>
    %cst_19 = arith.constant dense<0xFF800000> : vector<16x32xf32>
    %26 = vector.multi_reduction <maximumf>, %25, %cst_19 [1] : vector<16x8x32xf32> to vector<16x32xf32>
    %27 = vector.shape_cast %26 : vector<16x32xf32> to vector<16x1x32xf32>
    %28 = vector.broadcast %27 : vector<16x1x32xf32> to vector<16x8x32xf32>
    %29 = arith.subf %25, %28 : vector<16x8x32xf32>
    %30 = math.exp %29 : vector<16x8x32xf32>
    %cst_20 = arith.constant dense<0.000000e+00> : vector<16x32xf32>
    %31 = vector.multi_reduction <add>, %30, %cst_20 [1] : vector<16x8x32xf32> to vector<16x32xf32>
    %32 = vector.shape_cast %31 : vector<16x32xf32> to vector<16x1x32xf32>
    %33 = vector.broadcast %3 : vector<16x8x1xf32> to vector<16x8x32xf32>
    %34 = arith.mulf %33, %30 : vector<16x8x32xf32>
    %35 = tpu.reciprocal %32 {approx = true} : vector<16x1x32xf32> -> vector<16x1x32xf32>
    %36 = vector.broadcast %35 : vector<16x1x32xf32> to vector<16x8x32xf32>
    %37 = arith.mulf %34, %36 : vector<16x8x32xf32>
    %38 = vector.shape_cast %9 : vector<128x32xf32> to vector<16x8x32xf32>
    %39 = arith.mulf %37, %38 : vector<16x8x32xf32>
    %cst_21 = arith.constant dense<0.000000e+00> : vector<16x32xf32>
    %40 = vector.multi_reduction <add>, %39, %cst_21 [1] : vector<16x8x32xf32> to vector<16x32xf32>
    %c0_22 = arith.constant 0 : index
    %c0_23 = arith.constant 0 : index
    %41 = vector.load %arg9[%c0_22, %c0_23] : memref<32x32xf32, #tpu.memory_space<vmem>>, vector<32x32xf32>
    %cst_24 = arith.constant dense<0.000000e+00> : vector<16x32xf32>
    %42 = tpu.matmul %40, %41, %cst_24 {dimension_numbers = #tpu.dot_dimension_numbers<[1], [0], [0], [1], [0, 0, 1, 1], [], []>} : vector<16x32xf32>, vector<32x32xf32>, vector<16x32xf32> -> vector<16x32xf32>
    %43 = arith.addf %0, %42 : vector<16x32xf32>
    %c0_25 = arith.constant 0 : index
    %c0_26 = arith.constant 0 : index
    %44 = vector.load %arg10[%c0_25, %c0_26] : memref<1x32xf32, #tpu.memory_space<vmem>>, vector<1x32xf32>
    %c0_27 = arith.constant 0 : index
    %c0_28 = arith.constant 0 : index
    %45 = vector.load %arg11[%c0_27, %c0_28] : memref<1x32xf32, #tpu.memory_space<vmem>>, vector<1x32xf32>
    %cst_29 = arith.constant dense<0.000000e+00> : vector<16xf32>
    %46 = vector.multi_reduction <add>, %43, %cst_29 [1] : vector<16x32xf32> to vector<16xf32>
    %47 = vector.shape_cast %46 : vector<16xf32> to vector<16x1xf32>
    %cst_30 = arith.constant 3.200000e+01 : f32
    %48 = vector.broadcast %cst_30 : f32 to vector<16x1xf32>
    %49 = arith.divf %47, %48 : vector<16x1xf32>
    %50 = vector.broadcast %49 : vector<16x1xf32> to vector<16x32xf32>
    %51 = arith.subf %43, %50 : vector<16x32xf32>
    %52 = arith.mulf %51, %51 : vector<16x32xf32>
    %cst_31 = arith.constant dense<0.000000e+00> : vector<16xf32>
    %53 = vector.multi_reduction <add>, %52, %cst_31 [1] : vector<16x32xf32> to vector<16xf32>
    %54 = vector.shape_cast %53 : vector<16xf32> to vector<16x1xf32>
    %cst_32 = arith.constant 3.100000e+01 : f32
    %55 = vector.broadcast %cst_32 : f32 to vector<16x1xf32>
    %56 = arith.divf %54, %55 : vector<16x1xf32>
    %cst_33 = arith.constant 9.99999997E-7 : f32
    %57 = vector.broadcast %cst_33 : f32 to vector<16x1xf32>
    %58 = arith.addf %56, %57 : vector<16x1xf32>
    %59 = math.sqrt %58 : vector<16x1xf32>
    %cst_34 = arith.constant 9.99999997E-7 : f32
    %60 = vector.broadcast %cst_34 : f32 to vector<16x1xf32>
    %61 = arith.addf %59, %60 : vector<16x1xf32>
    %62 = tpu.reciprocal %61 : vector<16x1xf32> -> vector<16x1xf32>
    %63 = vector.broadcast %49 : vector<16x1xf32> to vector<16x32xf32>
    %64 = arith.subf %43, %63 : vector<16x32xf32>
    %65 = vector.broadcast %44 : vector<1x32xf32> to vector<16x32xf32>
    %66 = vector.broadcast %62 : vector<16x1xf32> to vector<16x32xf32>
    %67 = arith.mulf %65, %66 : vector<16x32xf32>
    %68 = arith.mulf %64, %67 : vector<16x32xf32>
    %69 = vector.broadcast %45 : vector<1x32xf32> to vector<16x32xf32>
    %70 = arith.addf %68, %69 : vector<16x32xf32>
    %c0_35 = arith.constant 0 : index
    %c0_36 = arith.constant 0 : index
    %71 = vector.load %arg14[%c0_35, %c0_36] : memref<32x128xf32, #tpu.memory_space<vmem>>, vector<32x128xf32>
    %cst_37 = arith.constant dense<0.000000e+00> : vector<16x128xf32>
    %72 = tpu.matmul %70, %71, %cst_37 {dimension_numbers = #tpu.dot_dimension_numbers<[1], [0], [0], [1], [0, 0, 1, 1], [], []>} : vector<16x32xf32>, vector<32x128xf32>, vector<16x128xf32> -> vector<16x128xf32>
    %c0_38 = arith.constant 0 : index
    %c0_39 = arith.constant 0 : index
    %73 = vector.load %arg15[%c0_38, %c0_39] : memref<1x128xf32, #tpu.memory_space<vmem>>, vector<1x128xf32>
    %74 = vector.broadcast %73 : vector<1x128xf32> to vector<16x128xf32>
    %75 = arith.addf %72, %74 : vector<16x128xf32>
    %cst_40 = arith.constant 0.000000e+00 : f32
    %76 = vector.broadcast %cst_40 : f32 to vector<16x128xf32>
    %77 = arith.maximumf %75, %76 : vector<16x128xf32>
    %c0_41 = arith.constant 0 : index
    %c0_42 = arith.constant 0 : index
    %78 = vector.load %arg16[%c0_41, %c0_42] : memref<128x32xf32, #tpu.memory_space<vmem>>, vector<128x32xf32>
    %cst_43 = arith.constant dense<0.000000e+00> : vector<16x32xf32>
    %79 = tpu.matmul %77, %78, %cst_43 {dimension_numbers = #tpu.dot_dimension_numbers<[1], [0], [0], [1], [0, 0, 1, 1], [], []>} : vector<16x128xf32>, vector<128x32xf32>, vector<16x32xf32> -> vector<16x32xf32>
    %c0_44 = arith.constant 0 : index
    %c0_45 = arith.constant 0 : index
    %80 = vector.load %arg17[%c0_44, %c0_45] : memref<1x32xf32, #tpu.memory_space<vmem>>, vector<1x32xf32>
    %81 = vector.broadcast %80 : vector<1x32xf32> to vector<16x32xf32>
    %82 = arith.addf %79, %81 : vector<16x32xf32>
    %83 = arith.addf %70, %82 : vector<16x32xf32>
    %c0_46 = arith.constant 0 : index
    %c0_47 = arith.constant 0 : index
    %84 = vector.load %arg12[%c0_46, %c0_47] : memref<1x32xf32, #tpu.memory_space<vmem>>, vector<1x32xf32>
    %c0_48 = arith.constant 0 : index
    %c0_49 = arith.constant 0 : index
    %85 = vector.load %arg13[%c0_48, %c0_49] : memref<1x32xf32, #tpu.memory_space<vmem>>, vector<1x32xf32>
    %cst_50 = arith.constant dense<0.000000e+00> : vector<16xf32>
    %86 = vector.multi_reduction <add>, %83, %cst_50 [1] : vector<16x32xf32> to vector<16xf32>
    %87 = vector.shape_cast %86 : vector<16xf32> to vector<16x1xf32>
    %cst_51 = arith.constant 3.200000e+01 : f32
    %88 = vector.broadcast %cst_51 : f32 to vector<16x1xf32>
    %89 = arith.divf %87, %88 : vector<16x1xf32>
    %90 = vector.broadcast %89 : vector<16x1xf32> to vector<16x32xf32>
    %91 = arith.subf %83, %90 : vector<16x32xf32>
    %92 = arith.mulf %91, %91 : vector<16x32xf32>
    %cst_52 = arith.constant dense<0.000000e+00> : vector<16xf32>
    %93 = vector.multi_reduction <add>, %92, %cst_52 [1] : vector<16x32xf32> to vector<16xf32>
    %94 = vector.shape_cast %93 : vector<16xf32> to vector<16x1xf32>
    %cst_53 = arith.constant 3.100000e+01 : f32
    %95 = vector.broadcast %cst_53 : f32 to vector<16x1xf32>
    %96 = arith.divf %94, %95 : vector<16x1xf32>
    %cst_54 = arith.constant 9.99999997E-7 : f32
    %97 = vector.broadcast %cst_54 : f32 to vector<16x1xf32>
    %98 = arith.addf %96, %97 : vector<16x1xf32>
    %99 = math.sqrt %98 : vector<16x1xf32>
    %cst_55 = arith.constant 9.99999997E-7 : f32
    %100 = vector.broadcast %cst_55 : f32 to vector<16x1xf32>
    %101 = arith.addf %99, %100 : vector<16x1xf32>
    %102 = tpu.reciprocal %101 : vector<16x1xf32> -> vector<16x1xf32>
    %103 = vector.broadcast %89 : vector<16x1xf32> to vector<16x32xf32>
    %104 = arith.subf %83, %103 : vector<16x32xf32>
    %105 = vector.broadcast %84 : vector<1x32xf32> to vector<16x32xf32>
    %106 = vector.broadcast %102 : vector<16x1xf32> to vector<16x32xf32>
    %107 = arith.mulf %105, %106 : vector<16x32xf32>
    %108 = arith.mulf %104, %107 : vector<16x32xf32>
    %109 = vector.broadcast %85 : vector<1x32xf32> to vector<16x32xf32>
    %110 = arith.addf %108, %109 : vector<16x32xf32>
    %c0_56 = arith.constant 0 : index
    %c0_57 = arith.constant 0 : index
    %111 = vector.load %arg4[%c0_56, %c0_57] : memref<16x1xf32, #tpu.memory_space<vmem>>, vector<16x1xf32>
    %112 = vector.broadcast %111 : vector<16x1xf32> to vector<16x32xf32>
    %113 = arith.mulf %112, %110 : vector<16x32xf32>
    %c0_58 = arith.constant 0 : index
    %c0_59 = arith.constant 0 : index
    %114 = vector.load %arg18[%c0_58, %c0_59] : memref<16x32xf32, #tpu.memory_space<vmem>>, vector<16x32xf32>
    tpu.vector_store %arg18[%c0_58, %c0_59], %113 {strides = array<i32>} : memref<16x32xf32, #tpu.memory_space<vmem>>, vector<16x32xf32>,
    return
  }
  func.func @transform_0(%arg0: i32) -> (i32, i32) {
    %c0_i32 = arith.constant 0 : i32
    %c0_i32_0 = arith.constant 0 : i32
    return %arg0, %c0_i32 : i32, i32
  }
  func.func @transform_1(%arg0: i32) -> (i32, i32) {
    %c0_i32 = arith.constant 0 : i32
    %c0_i32_0 = arith.constant 0 : i32
    return %arg0, %c0_i32 : i32, i32
  }
  func.func @transform_2(%arg0: i32) -> (i32, i32) {
    %c0_i32 = arith.constant 0 : i32
    %c0_i32_0 = arith.constant 0 : i32
    return %arg0, %c0_i32 : i32, i32
  }
  func.func @transform_3(%arg0: i32) -> (i32, i32) {
    %c0_i32 = arith.constant 0 : i32
    %c0_i32_0 = arith.constant 0 : i32
    return %arg0, %c0_i32 : i32, i32
  }
  func.func @transform_4(%arg0: i32) -> (i32, i32) {
    %c0_i32 = arith.constant 0 : i32
    %c0_i32_0 = arith.constant 0 : i32
    %c0_i32_1 = arith.constant 0 : i32
    return %c0_i32, %c0_i32_0 : i32, i32
  }
  func.func @transform_5(%arg0: i32) -> (i32, i32) {
    %c0_i32 = arith.constant 0 : i32
    %c0_i32_0 = arith.constant 0 : i32
    %c0_i32_1 = arith.constant 0 : i32
    return %c0_i32, %c0_i32_0 : i32, i32
  }
  func.func @transform_6(%arg0: i32) -> (i32, i32) {
    %c0_i32 = arith.constant 0 : i32
    %c0_i32_0 = arith.constant 0 : i32
    %c0_i32_1 = arith.constant 0 : i32
    return %c0_i32, %c0_i32_0 : i32, i32
  }
  func.func @transform_7(%arg0: i32) -> (i32, i32) {
    %c0_i32 = arith.constant 0 : i32
    %c0_i32_0 = arith.constant 0 : i32
    %c0_i32_1 = arith.constant 0 : i32
    return %c0_i32, %c0_i32_0 : i32, i32
  }
  func.func @transform_8(%arg0: i32) -> (i32, i32) {
    %c0_i32 = arith.constant 0 : i32
    %c0_i32_0 = arith.constant 0 : i32
    %c0_i32_1 = arith.constant 0 : i32
    return %c0_i32, %c0_i32_0 : i32, i32
  }
  func.func @transform_9(%arg0: i32) -> (i32, i32) {
    %c0_i32 = arith.constant 0 : i32
    %c0_i32_0 = arith.constant 0 : i32
    %c0_i32_1 = arith.constant 0 : i32
    return %c0_i32, %c0_i32_0 : i32, i32
  }
  func.func @transform_10(%arg0: i32) -> (i32, i32) {
    %c0_i32 = arith.constant 0 : i32
    %c0_i32_0 = arith.constant 0 : i32
    %c0_i32_1 = arith.constant 0 : i32
    return %c0_i32, %c0_i32_0 : i32, i32
  }
  func.func @transform_11(%arg0: i32) -> (i32, i32) {
    %c0_i32 = arith.constant 0 : i32
    %c0_i32_0 = arith.constant 0 : i32
    %c0_i32_1 = arith.constant 0 : i32
    return %c0_i32, %c0_i32_0 : i32, i32
  }
  func.func @transform_12(%arg0: i32) -> (i32, i32) {
    %c0_i32 = arith.constant 0 : i32
    %c0_i32_0 = arith.constant 0 : i32
    %c0_i32_1 = arith.constant 0 : i32
    return %c0_i32, %c0_i32_0 : i32, i32
  }
  func.func @transform_13(%arg0: i32) -> (i32, i32) {
    %c0_i32 = arith.constant 0 : i32
    %c0_i32_0 = arith.constant 0 : i32
    %c0_i32_1 = arith.constant 0 : i32
    return %c0_i32, %c0_i32_0 : i32, i32
  }
  func.func @transform_14(%arg0: i32) -> (i32, i32) {
    %c0_i32 = arith.constant 0 : i32
    %c0_i32_0 = arith.constant 0 : i32
    %c0_i32_1 = arith.constant 0 : i32
    return %c0_i32, %c0_i32_0 : i32, i32
  }
  func.func @transform_15(%arg0: i32) -> (i32, i32) {
    %c0_i32 = arith.constant 0 : i32
    %c0_i32_0 = arith.constant 0 : i32
    %c0_i32_1 = arith.constant 0 : i32
    return %c0_i32, %c0_i32_0 : i32, i32
  }
  func.func @transform_16(%arg0: i32) -> (i32, i32) {
    %c0_i32 = arith.constant 0 : i32
    %c0_i32_0 = arith.constant 0 : i32
    %c0_i32_1 = arith.constant 0 : i32
    return %c0_i32, %c0_i32_0 : i32, i32
  }
  func.func @transform_17(%arg0: i32) -> (i32, i32) {
    %c0_i32 = arith.constant 0 : i32
    %c0_i32_0 = arith.constant 0 : i32
    return %arg0, %c0_i32 : i32, i32
  }
}

</mosaic_0001>

<llo_original>
// kernel: tpu_custom_call.1
$region0: #{tpu_custom_call.1}
  #allocation0 [shape = 'u32[]', space=smem, size = 0x4, offset = 0x4, fixed_abs, tag = 'smem constant byte address 0x4 - core index']
  #allocation1 [shape = 'u32[144,128]{1,0:T(1,128)}', space=vmem, size = 0x12000, scoped, tag = 'internal scratch']
  %s0 = inlined_call_operand.vmem [shape: f32[16,32], index: 0, kind: input, shape index: {}]
  %s1 = inlined_call_operand.vmem [shape: f32[128,32], index: 1, kind: input, shape index: {}]
  %s2 = inlined_call_operand.vmem [shape: f32[16,8], index: 2, kind: input, shape index: {}]
  %s3 = inlined_call_operand.vmem [shape: f32[16,1], index: 3, kind: input, shape index: {}]
  %s4 = inlined_call_operand.vmem [shape: f32[32,32], index: 4, kind: input, shape index: {}]
  %s5 = inlined_call_operand.vmem [shape: f32[32,32], index: 5, kind: input, shape index: {}]
  %s6 = inlined_call_operand.vmem [shape: f32[32,32], index: 6, kind: input, shape index: {}]
  %s7 = inlined_call_operand.vmem [shape: f32[32,32], index: 7, kind: input, shape index: {}]
  %s8 = inlined_call_operand.vmem [shape: f32[32,32], index: 8, kind: input, shape index: {}]
  %s9 = inlined_call_operand.vmem [shape: f32[1,32], index: 9, kind: input, shape index: {}]
  %s10 = inlined_call_operand.vmem [shape: f32[1,32], index: 10, kind: input, shape index: {}]
  %s11 = inlined_call_operand.vmem [shape: f32[1,32], index: 11, kind: input, shape index: {}]
  %s12 = inlined_call_operand.vmem [shape: f32[1,32], index: 12, kind: input, shape index: {}]
  %s13 = inlined_call_operand.vmem [shape: f32[32,128], index: 13, kind: input, shape index: {}]
  %s14 = inlined_call_operand.vmem [shape: f32[1,128], index: 14, kind: input, shape index: {}]
  %s15 = inlined_call_operand.vmem [shape: f32[128,32], index: 15, kind: input, shape index: {}]
  %s16 = inlined_call_operand.vmem [shape: f32[1,32], index: 16, kind: input, shape index: {}]
  %s17 = inlined_call_operand.hbm [shape: f32[16,32], index: 17, kind: output, shape index: {}]
  %s18 = sld [smem:[#allocation0]]
  $region78: #{tpu_custom_call.1} parent=0
    _
  %s20 = ssub.s32 1, %s18
  %s21 = scalar_select 0, %s20, %s18
  $region1: #{tpu_custom_call.1} parent=0
    #allocation2 [shape = 'u8[8192]{0}', space=vmem, size = 0x2000, scoped, tag = 'output window, operand 0, single buffered']
    #allocation3 [shape = 's32[1]{0}', space=sflag, size = 0x4, scoped, tag = 'scoped memory for tpu_custom_call.1']
    %22 = vsyncpa [#allocation3], 0
    // Predicated region
    $region2: #{tpu_custom_call.1} parent=1 // pred_check
      _
    $region3: #{tpu_custom_call.1} parent=1 // pred_check_branch
      %24 = sbr.rel (0) target = $region5
    $region4: #{tpu_custom_call.1} parent=1 // pred_region
      _
    $region5: #{tpu_custom_call.1} parent=1 // pred_fallthru
      _
    // Predicated region
    $region6: #{tpu_custom_call.1} parent=1 // pred_check
      _
    $region7: #{tpu_custom_call.1} parent=1 // pred_check_branch
      %26 = sbr.rel (0) target = $region9
    $region8: #{tpu_custom_call.1} parent=1 // pred_region
      _
    $region9: #{tpu_custom_call.1} parent=1 // pred_fallthru
      _
    // Predicated region
    $region10: #{tpu_custom_call.1} parent=1 // pred_check
      _
    $region11: #{tpu_custom_call.1} parent=1 // pred_check_branch
      %28 = sbr.rel (0) target = $region13
    $region12: #{tpu_custom_call.1} parent=1 // pred_region
      _
    $region13: #{tpu_custom_call.1} parent=1 // pred_fallthru
      _
    // Predicated region
    $region14: #{tpu_custom_call.1} parent=1 // pred_check
      _
    $region15: #{tpu_custom_call.1} parent=1 // pred_check_branch
      %30 = sbr.rel (0) target = $region17
    $region16: #{tpu_custom_call.1} parent=1 // pred_region
      _
    $region17: #{tpu_custom_call.1} parent=1 // pred_fallthru
      _
    // Predicated region
    $region18: #{tpu_custom_call.1} parent=1 // pred_check
      _
    $region19: #{tpu_custom_call.1} parent=1 // pred_check_branch
      %32 = sbr.rel (0) target = $region21
    $region20: #{tpu_custom_call.1} parent=1 // pred_region
      _
    $region21: #{tpu_custom_call.1} parent=1 // pred_fallthru
      _
    // Predicated region
    $region22: #{tpu_custom_call.1} parent=1 // pred_check
      _
    $region23: #{tpu_custom_call.1} parent=1 // pred_check_branch
      %34 = sbr.rel (0) target = $region25
    $region24: #{tpu_custom_call.1} parent=1 // pred_region
      _
    $region25: #{tpu_custom_call.1} parent=1 // pred_fallthru
      _
    // Predicated region
    $region26: #{tpu_custom_call.1} parent=1 // pred_check
      _
    $region27: #{tpu_custom_call.1} parent=1 // pred_check_branch
      %36 = sbr.rel (0) target = $region29
    $region28: #{tpu_custom_call.1} parent=1 // pred_region
      _
    $region29: #{tpu_custom_call.1} parent=1 // pred_fallthru
      _
    // Predicated region
    $region30: #{tpu_custom_call.1} parent=1 // pred_check
      _
    $region31: #{tpu_custom_call.1} parent=1 // pred_check_branch
      %38 = sbr.rel (0) target = $region33
    $region32: #{tpu_custom_call.1} parent=1 // pred_region
      _
    $region33: #{tpu_custom_call.1} parent=1 // pred_fallthru
      _
    // Predicated region
    $region34: #{tpu_custom_call.1} parent=1 // pred_check
      _
    $region35: #{tpu_custom_call.1} parent=1 // pred_check_branch
      %40 = sbr.rel (0) target = $region37
    $region36: #{tpu_custom_call.1} parent=1 // pred_region
      _
    $region37: #{tpu_custom_call.1} parent=1 // pred_fallthru
      _
    // Predicated region
    $region38: #{tpu_custom_call.1} parent=1 // pred_check
      _
    $region39: #{tpu_custom_call.1} parent=1 // pred_check_branch
      %42 = sbr.rel (0) target = $region41
    $region40: #{tpu_custom_call.1} parent=1 // pred_region
      _
    $region41: #{tpu_custom_call.1} parent=1 // pred_fallthru
      _
    // Predicated region
    $region42: #{tpu_custom_call.1} parent=1 // pred_check
      _
    $region43: #{tpu_custom_call.1} parent=1 // pred_check_branch
      %44 = sbr.rel (0) target = $region45
    $region44: #{tpu_custom_call.1} parent=1 // pred_region
      _
    $region45: #{tpu_custom_call.1} parent=1 // pred_fallthru
      _
    // Predicated region
    $region46: #{tpu_custom_call.1} parent=1 // pred_check
      _
    $region47: #{tpu_custom_call.1} parent=1 // pred_check_branch
      %46 = sbr.rel (0) target = $region49
    $region48: #{tpu_custom_call.1} parent=1 // pred_region
      _
    $region49: #{tpu_custom_call.1} parent=1 // pred_fallthru
      _
    // Predicated region
    $region50: #{tpu_custom_call.1} parent=1 // pred_check
      _
    $region51: #{tpu_custom_call.1} parent=1 // pred_check_branch
      %48 = sbr.rel (0) target = $region53
    $region52: #{tpu_custom_call.1} parent=1 // pred_region
      _
    $region53: #{tpu_custom_call.1} parent=1 // pred_fallthru
      _
    // Predicated region
    $region54: #{tpu_custom_call.1} parent=1 // pred_check
      _
    $region55: #{tpu_custom_call.1} parent=1 // pred_check_branch
      %50 = sbr.rel (0) target = $region57
    $region56: #{tpu_custom_call.1} parent=1 // pred_region
      _
    $region57: #{tpu_custom_call.1} parent=1 // pred_fallthru
      _
    // Predicated region
    $region58: #{tpu_custom_call.1} parent=1 // pred_check
      _
    $region59: #{tpu_custom_call.1} parent=1 // pred_check_branch
      %52 = sbr.rel (0) target = $region61
    $region60: #{tpu_custom_call.1} parent=1 // pred_region
      _
    $region61: #{tpu_custom_call.1} parent=1 // pred_fallthru
      _
    // Predicated region
    $region62: #{tpu_custom_call.1} parent=1 // pred_check
      _
    $region63: #{tpu_custom_call.1} parent=1 // pred_check_branch
      %54 = sbr.rel (0) target = $region65
    $region64: #{tpu_custom_call.1} parent=1 // pred_region
      _
    $region65: #{tpu_custom_call.1} parent=1 // pred_fallthru
      _
    // Predicated region
    $region66: #{tpu_custom_call.1} parent=1 // pred_check
      _
    $region67: #{tpu_custom_call.1} parent=1 // pred_check_branch
      %56 = sbr.rel (0) target = $region69
    $region68: #{tpu_custom_call.1} parent=1 // pred_region
      _
    $region69: #{tpu_custom_call.1} parent=1 // pred_fallthru
      _
    %v57 = vld [vmem:[%s0] sm:$0xff]
    %v58 = vld [vmem:[%s0 + $0x8] sm:$0xff]
    %v59 = vld [vmem:[%s1] sm:$0xff]
    %v60 = vld [vmem:[%s1 + $0x8] sm:$0xff]
    %v61 = vld [vmem:[%s1 + $0x10] sm:$0xff]
    %v62 = vld [vmem:[%s1 + $0x18] sm:$0xff]
    %v63 = vld [vmem:[%s1 + $0x20] sm:$0xff]
    %v64 = vld [vmem:[%s1 + $0x28] sm:$0xff]
    %v65 = vld [vmem:[%s1 + $0x30] sm:$0xff]
    %v66 = vld [vmem:[%s1 + $0x38] sm:$0xff]
    %v67 = vld [vmem:[%s1 + $0x40] sm:$0xff]
    %v68 = vld [vmem:[%s1 + $0x48] sm:$0xff]
    %v69 = vld [vmem:[%s1 + $0x50] sm:$0xff]
    %v70 = vld [vmem:[%s1 + $0x58] sm:$0xff]
    %v71 = vld [vmem:[%s1 + $0x60] sm:$0xff]
    %v72 = vld [vmem:[%s1 + $0x68] sm:$0xff]
    %v73 = vld [vmem:[%s1 + $0x70] sm:$0xff]
    %v74 = vld [vmem:[%s1 + $0x78] sm:$0xff]
    %v75 = vld [vmem:[%s2] sm:$0xff]
    %v76 = vld [vmem:[%s2 + $0x8] sm:$0xff]
    %v77 = vlaneseq
    %v78 = vshrl.u32 %v77, 7
    %v79 = vsub.s32 0, %v78
    %v80 = vrot.slane %v75, %v79
    %82 = vbcast.lane.b32.xlu0 %v80, 256
    %v83 = vpop.permute.xlu0 %82
    %v84 = vlaneseq
    %v85 = vshrl.u32 %v84, 7
    %v86 = vsub.s32 1, %v85
    %v87 = vrot.slane %v75, %v86
    %89 = vbcast.lane.b32.xlu0 %v87, 256
    %v90 = vpop.permute.xlu0 %89
    %v91 = vlaneseq
    %v92 = vshrl.u32 %v91, 7
    %v93 = vsub.s32 2, %v92
    %v94 = vrot.slane %v75, %v93
    %96 = vbcast.lane.b32.xlu0 %v94, 256
    %v97 = vpop.permute.xlu0 %96
    %v98 = vlaneseq
    %v99 = vshrl.u32 %v98, 7
    %v100 = vsub.s32 3, %v99
    %v101 = vrot.slane %v75, %v100
    %103 = vbcast.lane.b32.xlu0 %v101, 256
    %v104 = vpop.permute.xlu0 %103
    %v105 = vlaneseq
    %v106 = vshrl.u32 %v105, 7
    %v107 = vsub.s32 4, %v106
    %v108 = vrot.slane %v75, %v107
    %110 = vbcast.lane.b32.xlu0 %v108, 256
    %v111 = vpop.permute.xlu0 %110
    %v112 = vlaneseq
    %v113 = vshrl.u32 %v112, 7
    %v114 = vsub.s32 5, %v113
    %v115 = vrot.slane %v75, %v114
    %117 = vbcast.lane.b32.xlu0 %v115, 256
    %v118 = vpop.permute.xlu0 %117
    %v119 = vlaneseq
    %v120 = vshrl.u32 %v119, 7
    %v121 = vsub.s32 6, %v120
    %v122 = vrot.slane %v75, %v121
    %124 = vbcast.lane.b32.xlu0 %v122, 256
    %v125 = vpop.permute.xlu0 %124
    %v126 = vlaneseq
    %v127 = vshrl.u32 %v126, 7
    %v128 = vsub.s32 7, %v127
    %v129 = vrot.slane %v75, %v128
    %131 = vbcast.lane.b32.xlu0 %v129, 256
    %v132 = vpop.permute.xlu0 %131
    %v133 = vlaneseq
    %v134 = vshrl.u32 %v133, 7
    %v135 = vsub.s32 0, %v134
    %v136 = vrot.slane %v76, %v135
    %138 = vbcast.lane.b32.xlu0 %v136, 256
    %v139 = vpop.permute.xlu0 %138
    %v140 = vlaneseq
    %v141 = vshrl.u32 %v140, 7
    %v142 = vsub.s32 1, %v141
    %v143 = vrot.slane %v76, %v142
    %145 = vbcast.lane.b32.xlu0 %v143, 256
    %v146 = vpop.permute.xlu0 %145
    %v147 = vlaneseq
    %v148 = vshrl.u32 %v147, 7
    %v149 = vsub.s32 2, %v148
    %v150 = vrot.slane %v76, %v149
    %152 = vbcast.lane.b32.xlu0 %v150, 256
    %v153 = vpop.permute.xlu0 %152
    %v154 = vlaneseq
    %v155 = vshrl.u32 %v154, 7
    %v156 = vsub.s32 3, %v155
    %v157 = vrot.slane %v76, %v156
    %159 = vbcast.lane.b32.xlu0 %v157, 256
    %v160 = vpop.permute.xlu0 %159
    %v161 = vlaneseq
    %v162 = vshrl.u32 %v161, 7
    %v163 = vsub.s32 4, %v162
    %v164 = vrot.slane %v76, %v163
    %166 = vbcast.lane.b32.xlu0 %v164, 256
    %v167 = vpop.permute.xlu0 %166
    %v168 = vlaneseq
    %v169 = vshrl.u32 %v168, 7
    %v170 = vsub.s32 5, %v169
    %v171 = vrot.slane %v76, %v170
    %173 = vbcast.lane.b32.xlu0 %v171, 256
    %v174 = vpop.permute.xlu0 %173
    %v175 = vlaneseq
    %v176 = vshrl.u32 %v175, 7
    %v177 = vsub.s32 6, %v176
    %v178 = vrot.slane %v76, %v177
    %180 = vbcast.lane.b32.xlu0 %v178, 256
    %v181 = vpop.permute.xlu0 %180
    %v182 = vlaneseq
    %v183 = vshrl.u32 %v182, 7
    %v184 = vsub.s32 7, %v183
    %v185 = vrot.slane %v76, %v184
    %187 = vbcast.lane.b32.xlu0 %v185, 256
    %v188 = vpop.permute.xlu0 %187
    %v189 = vld [vmem:[%s5] sm:$0xff]
    %v190 = vld [vmem:[%s5 + $0x8] sm:$0xff]
    %v191 = vld [vmem:[%s5 + $0x10] sm:$0xff]
    %v192 = vld [vmem:[%s5 + $0x18] sm:$0xff]
    %vm193 = vcmask 261120
    %v195 = vsel %vm193, %v57, 0
    %v198 = vsel %vm193, %v58, 0
    %200 = vmatprep.subr.mxu0 0.0
    %201 = vmatpush1.msra.mxu0 %v189
    %202 = vmatprep.subr.mxu0 0.0
    %203 = vmatpush1.msra.mxu0 %v190
    %204 = vmatprep.subr.mxu0 0.0
    %205 = vmatpush1.msra.mxu0 %v191
    %206 = vmatprep.subr.mxu0 0.0
    %207 = vmatpush1.msra.mxu0 %v192
    %208 = vmatprep.subr.mxu0 0.0
    %209 = vmatpush1.msra.mxu0 0.0
    %210 = vmatprep.subr.mxu0 0.0
    %211 = vmatpush1.msra.mxu0 0.0
    %212 = vmatprep.subr.mxu0 0.0
    %213 = vmatpush1.msra.mxu0 0.0
    %214 = vmatprep.subr.mxu0 0.0
    %215 = vmatpush1.msra.mxu0 0.0
    %216 = vmatprep.subr.mxu0 0.0
    %217 = vmatpush1.msra.mxu0 0.0
    %218 = vmatprep.subr.mxu0 0.0
    %219 = vmatpush1.msra.mxu0 0.0
    %220 = vmatprep.subr.mxu0 0.0
    %221 = vmatpush1.msra.mxu0 0.0
    %222 = vmatprep.subr.mxu0 0.0
    %223 = vmatpush1.msra.mxu0 0.0
    %224 = vmatprep.subr.mxu0 0.0
    %225 = vmatpush1.msra.mxu0 0.0
    %226 = vmatprep.subr.mxu0 0.0
    %227 = vmatpush1.msra.mxu0 0.0
    %228 = vmatprep.subr.mxu0 0.0
    %229 = vmatpush1.msra.mxu0 0.0
    %230 = vmatprep.subr.mxu0 0.0
    %231 = vmatpush1.msra.mxu0 0.0
    %232 = vmatprep.subr.mxu0 0.0
    %233 = vmatpush1.msra.mxu0 0.0
    %234 = vmatprep.subr.mxu0 0.0
    %235 = vmatpush1.msra.mxu0 0.0
    %236 = vmatprep.subr.mxu0 0.0
    %237 = vmatpush1.msra.mxu0 0.0
    %238 = vmatprep.subr.mxu0 0.0
    %239 = vmatpush1.msra.mxu0 0.0
    %240 = vmatprep.subr.mxu0 0.0
    %241 = vmatpush1.msra.mxu0 0.0
    %242 = vmatprep.subr.mxu0 0.0
    %243 = vmatpush1.msra.mxu0 0.0
    %244 = vmatprep.subr.mxu0 0.0
    %245 = vmatpush1.msra.mxu0 0.0
    %246 = vmatprep.subr.mxu0 0.0
    %247 = vmatpush1.msra.mxu0 0.0
    %248 = vmatprep.subr.mxu0 0.0
    %249 = vmatpush1.msra.mxu0 0.0
    %250 = vmatprep.subr.mxu0 0.0
    %251 = vmatpush1.msra.mxu0 0.0
    %252 = vmatprep.subr.mxu0 0.0
    %253 = vmatpush1.msra.mxu0 0.0
    %254 = vmatprep.subr.mxu0 0.0
    %255 = vmatpush1.msra.mxu0 0.0
    %256 = vmatprep.subr.mxu0 0.0
    %257 = vmatpush1.msra.mxu0 0.0
    %258 = vmatprep.subr.mxu0 0.0
    %259 = vmatpush1.msra.mxu0 0.0
    %260 = vmatprep.subr.mxu0 0.0
    %261 = vmatpush1.msra.mxu0 0.0
    %262 = vmatprep.subr.mxu0 0.0
    %263 = vmatpush1.msra.mxu0 0.0
    %264 = vmatprep.mubr.f32.mxu0 0.0
    %265 = vmatmul.mubr.f32.gmra.mrb[0].mxu0 %v195
    %v266 = vpop.f32.mrb[0].mxu0
    %v267 = vadd.f32 0.0, %v266
    %v268 = vpop.f32.mrb[0].mxu0
    %269 = vmatprep.mubr.f32.mxu0 0.0
    %270 = vmatmul.mubr.f32.gmra.mrb[0].mxu0 %v198
    %v271 = vpop.f32.mrb[0].mxu0
    %v272 = vadd.f32 0.0, %v271
    %v273 = vpop.f32.mrb[0].mxu0
    %274 = vdwg.mxu0
    %v275 = vld [vmem:[%s6] sm:$0xff]
    %v276 = vld [vmem:[%s6 + $0x8] sm:$0xff]
    %v277 = vld [vmem:[%s6 + $0x10] sm:$0xff]
    %v278 = vld [vmem:[%s6 + $0x18] sm:$0xff]
    %v280 = vsel %vm193, %v59, 0
    %v283 = vsel %vm193, %v60, 0
    %v286 = vsel %vm193, %v61, 0
    %v289 = vsel %vm193, %v62, 0
    %v292 = vsel %vm193, %v63, 0
    %v295 = vsel %vm193, %v64, 0
    %v298 = vsel %vm193, %v65, 0
    %v301 = vsel %vm193, %v66, 0
    %v304 = vsel %vm193, %v67, 0
    %v307 = vsel %vm193, %v68, 0
    %v310 = vsel %vm193, %v69, 0
    %v313 = vsel %vm193, %v70, 0
    %v316 = vsel %vm193, %v71, 0
    %v319 = vsel %vm193, %v72, 0
    %v322 = vsel %vm193, %v73, 0
    %v325 = vsel %vm193, %v74, 0
    %327 = vmatprep.subr.mxu0 0.0
    %328 = vmatpush1.msra.mxu0 %v275
    %329 = vmatprep.subr.mxu0 0.0
    %330 = vmatpush1.msra.mxu0 %v276
    %331 = vmatprep.subr.mxu0 0.0
    %332 = vmatpush1.msra.mxu0 %v277
    %333 = vmatprep.subr.mxu0 0.0
    %334 = vmatpush1.msra.mxu0 %v278
    %335 = vmatprep.subr.mxu0 0.0
    %336 = vmatpush1.msra.mxu0 0.0
    %337 = vmatprep.subr.mxu0 0.0
    %338 = vmatpush1.msra.mxu0 0.0
    %339 = vmatprep.subr.mxu0 0.0
    %340 = vmatpush1.msra.mxu0 0.0
    %341 = vmatprep.subr.mxu0 0.0
    %342 = vmatpush1.msra.mxu0 0.0
    %343 = vmatprep.subr.mxu0 0.0
    %344 = vmatpush1.msra.mxu0 0.0
    %345 = vmatprep.subr.mxu0 0.0
    %346 = vmatpush1.msra.mxu0 0.0
    %347 = vmatprep.subr.mxu0 0.0
    %348 = vmatpush1.msra.mxu0 0.0
    %349 = vmatprep.subr.mxu0 0.0
    %350 = vmatpush1.msra.mxu0 0.0
    %351 = vmatprep.subr.mxu0 0.0
    %352 = vmatpush1.msra.mxu0 0.0
    %353 = vmatprep.subr.mxu0 0.0
    %354 = vmatpush1.msra.mxu0 0.0
    %355 = vmatprep.subr.mxu0 0.0
    %356 = vmatpush1.msra.mxu0 0.0
    %357 = vmatprep.subr.mxu0 0.0
    %358 = vmatpush1.msra.mxu0 0.0
    %359 = vmatprep.subr.mxu0 0.0
    %360 = vmatpush1.msra.mxu0 0.0
    %361 = vmatprep.subr.mxu0 0.0
    %362 = vmatpush1.msra.mxu0 0.0
    %363 = vmatprep.subr.mxu0 0.0
    %364 = vmatpush1.msra.mxu0 0.0
    %365 = vmatprep.subr.mxu0 0.0
    %366 = vmatpush1.msra.mxu0 0.0
    %367 = vmatprep.subr.mxu0 0.0
    %368 = vmatpush1.msra.mxu0 0.0
    %369 = vmatprep.subr.mxu0 0.0
    %370 = vmatpush1.msra.mxu0 0.0
    %371 = vmatprep.subr.mxu0 0.0
    %372 = vmatpush1.msra.mxu0 0.0
    %373 = vmatprep.subr.mxu0 0.0
    %374 = vmatpush1.msra.mxu0 0.0
    %375 = vmatprep.subr.mxu0 0.0
    %376 = vmatpush1.msra.mxu0 0.0
    %377 = vmatprep.subr.mxu0 0.0
    %378 = vmatpush1.msra.mxu0 0.0
    %379 = vmatprep.subr.mxu0 0.0
    %380 = vmatpush1.msra.mxu0 0.0
    %381 = vmatprep.subr.mxu0 0.0
    %382 = vmatpush1.msra.mxu0 0.0
    %383 = vmatprep.subr.mxu0 0.0
    %384 = vmatpush1.msra.mxu0 0.0
    %385 = vmatprep.subr.mxu0 0.0
    %386 = vmatpush1.msra.mxu0 0.0
    %387 = vmatprep.subr.mxu0 0.0
    %388 = vmatpush1.msra.mxu0 0.0
    %389 = vmatprep.subr.mxu0 0.0
    %390 = vmatpush1.msra.mxu0 0.0
    %391 = vmatprep.mubr.f32.mxu0 0.0
    %392 = vmatmul.mubr.f32.gmra.mrb[0].mxu0 %v280
    %v393 = vpop.f32.mrb[0].mxu0
    %v394 = vadd.f32 0.0, %v393
    %v395 = vpop.f32.mrb[0].mxu0
    %396 = vmatprep.mubr.f32.mxu0 0.0
    %397 = vmatmul.mubr.f32.gmra.mrb[0].mxu0 %v283
    %v398 = vpop.f32.mrb[0].mxu0
    %v399 = vadd.f32 0.0, %v398
    %v400 = vpop.f32.mrb[0].mxu0
    %401 = vmatprep.mubr.f32.mxu0 0.0
    %402 = vmatmul.mubr.f32.gmra.mrb[0].mxu0 %v286
    %v403 = vpop.f32.mrb[0].mxu0
    %v404 = vadd.f32 0.0, %v403
    %v405 = vpop.f32.mrb[0].mxu0
    %406 = vmatprep.mubr.f32.mxu0 0.0
    %407 = vmatmul.mubr.f32.gmra.mrb[0].mxu0 %v289
    %v408 = vpop.f32.mrb[0].mxu0
    %v409 = vadd.f32 0.0, %v408
    %v410 = vpop.f32.mrb[0].mxu0
    %411 = vmatprep.mubr.f32.mxu0 0.0
    %412 = vmatmul.mubr.f32.gmra.mrb[0].mxu0 %v292
    %v413 = vpop.f32.mrb[0].mxu0
    %v414 = vadd.f32 0.0, %v413
    %v415 = vpop.f32.mrb[0].mxu0
    %416 = vmatprep.mubr.f32.mxu0 0.0
    %417 = vmatmul.mubr.f32.gmra.mrb[0].mxu0 %v295
    %v418 = vpop.f32.mrb[0].mxu0
    %v419 = vadd.f32 0.0, %v418
    %v420 = vpop.f32.mrb[0].mxu0
    %421 = vmatprep.mubr.f32.mxu0 0.0
    %422 = vmatmul.mubr.f32.gmra.mrb[0].mxu0 %v298
    %v423 = vpop.f32.mrb[0].mxu0
    %v424 = vadd.f32 0.0, %v423
    %v425 = vpop.f32.mrb[0].mxu0
    %426 = vmatprep.mubr.f32.mxu0 0.0
    %427 = vmatmul.mubr.f32.gmra.mrb[0].mxu0 %v301
    %v428 = vpop.f32.mrb[0].mxu0
    %v429 = vadd.f32 0.0, %v428
    %v430 = vpop.f32.mrb[0].mxu0
    %431 = vmatprep.mubr.f32.mxu0 0.0
    %432 = vmatmul.mubr.f32.gmra.mrb[0].mxu0 %v304
    %v433 = vpop.f32.mrb[0].mxu0
    %v434 = vadd.f32 0.0, %v433
    %v435 = vpop.f32.mrb[0].mxu0
    %436 = vmatprep.mubr.f32.mxu0 0.0
    %437 = vmatmul.mubr.f32.gmra.mrb[0].mxu0 %v307
    %v438 = vpop.f32.mrb[0].mxu0
    %v439 = vadd.f32 0.0, %v438
    %v440 = vpop.f32.mrb[0].mxu0
    %441 = vmatprep.mubr.f32.mxu0 0.0
    %442 = vmatmul.mubr.f32.gmra.mrb[0].mxu0 %v310
    %v443 = vpop.f32.mrb[0].mxu0
    %v444 = vadd.f32 0.0, %v443
    %v445 = vpop.f32.mrb[0].mxu0
    %446 = vmatprep.mubr.f32.mxu0 0.0
    %447 = vmatmul.mubr.f32.gmra.mrb[0].mxu0 %v313
    %v448 = vpop.f32.mrb[0].mxu0
    %v449 = vadd.f32 0.0, %v448
    %v450 = vpop.f32.mrb[0].mxu0
    %451 = vmatprep.mubr.f32.mxu0 0.0
    %452 = vmatmul.mubr.f32.gmra.mrb[0].mxu0 %v316
    %v453 = vpop.f32.mrb[0].mxu0
    %v454 = vadd.f32 0.0, %v453
    %v455 = vpop.f32.mrb[0].mxu0
    %456 = vmatprep.mubr.f32.mxu0 0.0
    %457 = vmatmul.mubr.f32.gmra.mrb[0].mxu0 %v319
    %v458 = vpop.f32.mrb[0].mxu0
    %v459 = vadd.f32 0.0, %v458
    %v460 = vpop.f32.mrb[0].mxu0
    %461 = vmatprep.mubr.f32.mxu0 0.0
    %462 = vmatmul.mubr.f32.gmra.mrb[0].mxu0 %v322
    %v463 = vpop.f32.mrb[0].mxu0
    %v464 = vadd.f32 0.0, %v463
    %v465 = vpop.f32.mrb[0].mxu0
    %466 = vmatprep.mubr.f32.mxu0 0.0
    %467 = vmatmul.mubr.f32.gmra.mrb[0].mxu0 %v325
    %v468 = vpop.f32.mrb[0].mxu0
    %v469 = vadd.f32 0.0, %v468
    %v470 = vpop.f32.mrb[0].mxu0
    %471 = vdwg.mxu0
    %v472 = vld [vmem:[%s7] sm:$0xff]
    %v473 = vld [vmem:[%s7 + $0x8] sm:$0xff]
    %v474 = vld [vmem:[%s7 + $0x10] sm:$0xff]
    %v475 = vld [vmem:[%s7 + $0x18] sm:$0xff]
    %476 = vmatprep.subr.mxu0 0.0
    %477 = vmatpush1.msra.mxu0 %v472
    %478 = vmatprep.subr.mxu0 0.0
    %479 = vmatpush1.msra.mxu0 %v473
    %480 = vmatprep.subr.mxu0 0.0
    %481 = vmatpush1.msra.mxu0 %v474
    %482 = vmatprep.subr.mxu0 0.0
    %483 = vmatpush1.msra.mxu0 %v475
    %484 = vmatprep.subr.mxu0 0.0
    %485 = vmatpush1.msra.mxu0 0.0
    %486 = vmatprep.subr.mxu0 0.0
    %487 = vmatpush1.msra.mxu0 0.0
    %488 = vmatprep.subr.mxu0 0.0
    %489 = vmatpush1.msra.mxu0 0.0
    %490 = vmatprep.subr.mxu0 0.0
    %491 = vmatpush1.msra.mxu0 0.0
    %492 = vmatprep.subr.mxu0 0.0
    %493 = vmatpush1.msra.mxu0 0.0
    %494 = vmatprep.subr.mxu0 0.0
    %495 = vmatpush1.msra.mxu0 0.0
    %496 = vmatprep.subr.mxu0 0.0
    %497 = vmatpush1.msra.mxu0 0.0
    %498 = vmatprep.subr.mxu0 0.0
    %499 = vmatpush1.msra.mxu0 0.0
    %500 = vmatprep.subr.mxu0 0.0
    %501 = vmatpush1.msra.mxu0 0.0
    %502 = vmatprep.subr.mxu0 0.0
    %503 = vmatpush1.msra.mxu0 0.0
    %504 = vmatprep.subr.mxu0 0.0
    %505 = vmatpush1.msra.mxu0 0.0
    %506 = vmatprep.subr.mxu0 0.0
    %507 = vmatpush1.msra.mxu0 0.0
    %508 = vmatprep.subr.mxu0 0.0
    %509 = vmatpush1.msra.mxu0 0.0
    %510 = vmatprep.subr.mxu0 0.0
    %511 = vmatpush1.msra.mxu0 0.0
    %512 = vmatprep.subr.mxu0 0.0
    %513 = vmatpush1.msra.mxu0 0.0
    %514 = vmatprep.subr.mxu0 0.0
    %515 = vmatpush1.msra.mxu0 0.0
    %516 = vmatprep.subr.mxu0 0.0
    %517 = vmatpush1.msra.mxu0 0.0
    %518 = vmatprep.subr.mxu0 0.0
    %519 = vmatpush1.msra.mxu0 0.0
    %520 = vmatprep.subr.mxu0 0.0
    %521 = vmatpush1.msra.mxu0 0.0
    %522 = vmatprep.subr.mxu0 0.0
    %523 = vmatpush1.msra.mxu0 0.0
    %524 = vmatprep.subr.mxu0 0.0
    %525 = vmatpush1.msra.mxu0 0.0
    %526 = vmatprep.subr.mxu0 0.0
    %527 = vmatpush1.msra.mxu0 0.0
    %528 = vmatprep.subr.mxu0 0.0
    %529 = vmatpush1.msra.mxu0 0.0
    %530 = vmatprep.subr.mxu0 0.0
    %531 = vmatpush1.msra.mxu0 0.0
    %532 = vmatprep.subr.mxu0 0.0
    %533 = vmatpush1.msra.mxu0 0.0
    %534 = vmatprep.subr.mxu0 0.0
    %535 = vmatpush1.msra.mxu0 0.0
    %536 = vmatprep.subr.mxu0 0.0
    %537 = vmatpush1.msra.mxu0 0.0
    %538 = vmatprep.subr.mxu0 0.0
    %539 = vmatpush1.msra.mxu0 0.0
    %540 = vmatprep.mubr.f32.mxu0 0.0
    %541 = vmatmul.mubr.f32.gmra.mrb[0].mxu0 %v280
    %v542 = vpop.f32.mrb[0].mxu0
    %v543 = vadd.f32 0.0, %v542
    %v544 = vpop.f32.mrb[0].mxu0
    %545 = vmatprep.mubr.f32.mxu0 0.0
    %546 = vmatmul.mubr.f32.gmra.mrb[0].mxu0 %v283
    %v547 = vpop.f32.mrb[0].mxu0
    %v548 = vadd.f32 0.0, %v547
    %v549 = vpop.f32.mrb[0].mxu0
    %550 = vmatprep.mubr.f32.mxu0 0.0
    %551 = vmatmul.mubr.f32.gmra.mrb[0].mxu0 %v286
    %v552 = vpop.f32.mrb[0].mxu0
    %v553 = vadd.f32 0.0, %v552
    %v554 = vpop.f32.mrb[0].mxu0
    %555 = vmatprep.mubr.f32.mxu0 0.0
    %556 = vmatmul.mubr.f32.gmra.mrb[0].mxu0 %v289
    %v557 = vpop.f32.mrb[0].mxu0
    %v558 = vadd.f32 0.0, %v557
    %v559 = vpop.f32.mrb[0].mxu0
    %560 = vmatprep.mubr.f32.mxu0 0.0
    %561 = vmatmul.mubr.f32.gmra.mrb[0].mxu0 %v292
    %v562 = vpop.f32.mrb[0].mxu0
    %v563 = vadd.f32 0.0, %v562
    %v564 = vpop.f32.mrb[0].mxu0
    %565 = vmatprep.mubr.f32.mxu0 0.0
    %566 = vmatmul.mubr.f32.gmra.mrb[0].mxu0 %v295
    %v567 = vpop.f32.mrb[0].mxu0
    %v568 = vadd.f32 0.0, %v567
    %v569 = vpop.f32.mrb[0].mxu0
    %570 = vmatprep.mubr.f32.mxu0 0.0
    %571 = vmatmul.mubr.f32.gmra.mrb[0].mxu0 %v298
    %v572 = vpop.f32.mrb[0].mxu0
    %v573 = vadd.f32 0.0, %v572
    %v574 = vpop.f32.mrb[0].mxu0
    %575 = vmatprep.mubr.f32.mxu0 0.0
    %576 = vmatmul.mubr.f32.gmra.mrb[0].mxu0 %v301
    %v577 = vpop.f32.mrb[0].mxu0
    %v578 = vadd.f32 0.0, %v577
    %v579 = vpop.f32.mrb[0].mxu0
    %580 = vmatprep.mubr.f32.mxu0 0.0
    %581 = vmatmul.mubr.f32.gmra.mrb[0].mxu0 %v304
    %v582 = vpop.f32.mrb[0].mxu0
    %v583 = vadd.f32 0.0, %v582
    %v584 = vpop.f32.mrb[0].mxu0
    %585 = vmatprep.mubr.f32.mxu0 0.0
    %586 = vmatmul.mubr.f32.gmra.mrb[0].mxu0 %v307
    %v587 = vpop.f32.mrb[0].mxu0
    %v588 = vadd.f32 0.0, %v587
    %v589 = vpop.f32.mrb[0].mxu0
    %590 = vmatprep.mubr.f32.mxu0 0.0
    %591 = vmatmul.mubr.f32.gmra.mrb[0].mxu0 %v310
    %v592 = vpop.f32.mrb[0].mxu0
    %v593 = vadd.f32 0.0, %v592
    %v594 = vpop.f32.mrb[0].mxu0
    %595 = vmatprep.mubr.f32.mxu0 0.0
    %596 = vmatmul.mubr.f32.gmra.mrb[0].mxu0 %v313
    %v597 = vpop.f32.mrb[0].mxu0
    %v598 = vadd.f32 0.0, %v597
    %v599 = vpop.f32.mrb[0].mxu0
    %600 = vmatprep.mubr.f32.mxu0 0.0
    %601 = vmatmul.mubr.f32.gmra.mrb[0].mxu0 %v316
    %v602 = vpop.f32.mrb[0].mxu0
    %v603 = vadd.f32 0.0, %v602
    %v604 = vpop.f32.mrb[0].mxu0
    %605 = vmatprep.mubr.f32.mxu0 0.0
    %606 = vmatmul.mubr.f32.gmra.mrb[0].mxu0 %v319
    %v607 = vpop.f32.mrb[0].mxu0
    %v608 = vadd.f32 0.0, %v607
    %v609 = vpop.f32.mrb[0].mxu0
    %610 = vmatprep.mubr.f32.mxu0 0.0
    %611 = vmatmul.mubr.f32.gmra.mrb[0].mxu0 %v322
    %v612 = vpop.f32.mrb[0].mxu0
    %v613 = vadd.f32 0.0, %v612
    %v614 = vpop.f32.mrb[0].mxu0
    %615 = vmatprep.mubr.f32.mxu0 0.0
    %616 = vmatmul.mubr.f32.gmra.mrb[0].mxu0 %v325
    %v617 = vpop.f32.mrb[0].mxu0
    %v618 = vadd.f32 0.0, %v617
    %v619 = vpop.f32.mrb[0].mxu0
    %620 = vdwg.mxu0
    %v623 = vcombine.high %v267, %v267
    %v625 = vunpack.c.l.s4 1966171168
    %v626 = vunpack.c.0.s8 %v625
    %v627 = vlaneseq
    %v628 = vshrl.u32 %v627, 7
    %v629 = vsub.s32 %v626, %v628
    %v630 = vrot.slane %v267, %v629
    %v632 = vunpack.c.l.s4 1966171168
    %v633 = vunpack.c.0.s8 %v632
    %v634 = vlaneseq
    %v635 = vshrl.u32 %v634, 7
    %v636 = vsub.s32 %v633, %v635
    %v637 = vrot.slane %v623, %v636
    %v638 = vcombine.high %v630, %v630
    %v639 = vcombine.high %v637, %v637
    %v641 = vunpack.c.l.s4 1966171168
    %v642 = vunpack.c.0.s8 %v641
    %v643 = vlaneseq
    %v644 = vshrl.u32 %v643, 7
    %v645 = vsub.s32 %v642, %v644
    %v646 = vrot.slane %v630, %v645
    %v648 = vunpack.c.l.s4 1966171168
    %v649 = vunpack.c.0.s8 %v648
    %v650 = vlaneseq
    %v651 = vshrl.u32 %v650, 7
    %v652 = vsub.s32 %v649, %v651
    %v653 = vrot.slane %v637, %v652
    %v655 = vunpack.c.l.s4 1966171168
    %v656 = vunpack.c.0.s8 %v655
    %v657 = vlaneseq
    %v658 = vshrl.u32 %v657, 7
    %v659 = vsub.s32 %v656, %v658
    %v660 = vrot.slane %v638, %v659
    %v662 = vunpack.c.l.s4 1966171168
    %v663 = vunpack.c.0.s8 %v662
    %v664 = vlaneseq
    %v665 = vshrl.u32 %v664, 7
    %v666 = vsub.s32 %v663, %v665
    %v667 = vrot.slane %v639, %v666
    %v668 = vcombine.high %v646, %v646
    %v669 = vcombine.high %v653, %v653
    %v670 = vcombine.high %v660, %v660
    %v671 = vcombine.high %v667, %v667
    %v672 = vcombine.high %v272, %v272
    %v674 = vunpack.c.l.s4 1966171168
    %v675 = vunpack.c.0.s8 %v674
    %v676 = vlaneseq
    %v677 = vshrl.u32 %v676, 7
    %v678 = vsub.s32 %v675, %v677
    %v679 = vrot.slane %v272, %v678
    %v681 = vunpack.c.l.s4 1966171168
    %v682 = vunpack.c.0.s8 %v681
    %v683 = vlaneseq
    %v684 = vshrl.u32 %v683, 7
    %v685 = vsub.s32 %v682, %v684
    %v686 = vrot.slane %v672, %v685
    %v687 = vcombine.high %v679, %v679
    %v688 = vcombine.high %v686, %v686
    %v690 = vunpack.c.l.s4 1966171168
    %v691 = vunpack.c.0.s8 %v690
    %v692 = vlaneseq
    %v693 = vshrl.u32 %v692, 7
    %v694 = vsub.s32 %v691, %v693
    %v695 = vrot.slane %v679, %v694
    %v697 = vunpack.c.l.s4 1966171168
    %v698 = vunpack.c.0.s8 %v697
    %v699 = vlaneseq
    %v700 = vshrl.u32 %v699, 7
    %v701 = vsub.s32 %v698, %v700
    %v702 = vrot.slane %v686, %v701
    %v704 = vunpack.c.l.s4 1966171168
    %v705 = vunpack.c.0.s8 %v704
    %v706 = vlaneseq
    %v707 = vshrl.u32 %v706, 7
    %v708 = vsub.s32 %v705, %v707
    %v709 = vrot.slane %v687, %v708
    %v711 = vunpack.c.l.s4 1966171168
    %v712 = vunpack.c.0.s8 %v711
    %v713 = vlaneseq
    %v714 = vshrl.u32 %v713, 7
    %v715 = vsub.s32 %v712, %v714
    %v716 = vrot.slane %v688, %v715
    %v717 = vcombine.high %v695, %v695
    %v718 = vcombine.high %v702, %v702
    %v719 = vcombine.high %v709, %v709
    %v720 = vcombine.high %v716, %v716
    %v721 = vlaneseq
    %v722 = vshrl.u32 %v721, 7
    %v723 = vsub.s32 0, %v722
    %v724 = vrot.slane %v646, %v723
    %v725 = vlaneseq
    %v726 = vshrl.u32 %v725, 7
    %v727 = vsub.s32 0, %v726
    %v728 = vrot.slane %v660, %v727
    %v729 = vlaneseq
    %v730 = vshrl.u32 %v729, 7
    %v731 = vsub.s32 0, %v730
    %v732 = vrot.slane %v668, %v731
    %v733 = vlaneseq
    %v734 = vshrl.u32 %v733, 7
    %v735 = vsub.s32 0, %v734
    %v736 = vrot.slane %v670, %v735
    %v737 = vlaneseq
    %v738 = vshrl.u32 %v737, 7
    %v739 = vsub.s32 0, %v738
    %v740 = vrot.slane %v653, %v739
    %v741 = vlaneseq
    %v742 = vshrl.u32 %v741, 7
    %v743 = vsub.s32 0, %v742
    %v744 = vrot.slane %v667, %v743
    %v745 = vlaneseq
    %v746 = vshrl.u32 %v745, 7
    %v747 = vsub.s32 0, %v746
    %v748 = vrot.slane %v669, %v747
    %v749 = vlaneseq
    %v750 = vshrl.u32 %v749, 7
    %v751 = vsub.s32 0, %v750
    %v752 = vrot.slane %v671, %v751
    %v753 = vlaneseq
    %v754 = vshrl.u32 %v753, 7
    %v755 = vsub.s32 0, %v754
    %v756 = vrot.slane %v695, %v755
    %v757 = vlaneseq
    %v758 = vshrl.u32 %v757, 7
    %v759 = vsub.s32 0, %v758
    %v760 = vrot.slane %v709, %v759
    %v761 = vlaneseq
    %v762 = vshrl.u32 %v761, 7
    %v763 = vsub.s32 0, %v762
    %v764 = vrot.slane %v717, %v763
    %v765 = vlaneseq
    %v766 = vshrl.u32 %v765, 7
    %v767 = vsub.s32 0, %v766
    %v768 = vrot.slane %v719, %v767
    %v769 = vlaneseq
    %v770 = vshrl.u32 %v769, 7
    %v771 = vsub.s32 0, %v770
    %v772 = vrot.slane %v702, %v771
    %v773 = vlaneseq
    %v774 = vshrl.u32 %v773, 7
    %v775 = vsub.s32 0, %v774
    %v776 = vrot.slane %v716, %v775
    %v777 = vlaneseq
    %v778 = vshrl.u32 %v777, 7
    %v779 = vsub.s32 0, %v778
    %v780 = vrot.slane %v718, %v779
    %v781 = vlaneseq
    %v782 = vshrl.u32 %v781, 7
    %v783 = vsub.s32 0, %v782
    %v784 = vrot.slane %v720, %v783
    %v801 = vmul.f32 %v724, %v394
    %v802 = vmul.f32 %v728, %v399
    %v803 = vmul.f32 %v732, %v404
    %v804 = vmul.f32 %v736, %v409
    %v805 = vmul.f32 %v740, %v414
    %v806 = vmul.f32 %v744, %v419
    %v807 = vmul.f32 %v748, %v424
    %v808 = vmul.f32 %v752, %v429
    %v809 = vmul.f32 %v756, %v434
    %v810 = vmul.f32 %v760, %v439
    %v811 = vmul.f32 %v764, %v444
    %v812 = vmul.f32 %v768, %v449
    %v813 = vmul.f32 %v772, %v454
    %v814 = vmul.f32 %v776, %v459
    %v815 = vmul.f32 %v780, %v464
    %v816 = vmul.f32 %v784, %v469
    %v817 = vld [vmem:[%s4] sm:$0xff]
    %v818 = vld [vmem:[%s4 + $0x8] sm:$0xff]
    %v819 = vld [vmem:[%s4 + $0x10] sm:$0xff]
    %v820 = vld [vmem:[%s4 + $0x18] sm:$0xff]
    %v822 = vsel %vm193, %v801, 0
    %v825 = vsel %vm193, %v802, 0
    %v828 = vsel %vm193, %v803, 0
    %v831 = vsel %vm193, %v804, 0
    %v834 = vsel %vm193, %v805, 0
    %v837 = vsel %vm193, %v806, 0
    %v840 = vsel %vm193, %v807, 0
    %v843 = vsel %vm193, %v808, 0
    %v846 = vsel %vm193, %v809, 0
    %v849 = vsel %vm193, %v810, 0
    %v852 = vsel %vm193, %v811, 0
    %v855 = vsel %vm193, %v812, 0
    %v858 = vsel %vm193, %v813, 0
    %v861 = vsel %vm193, %v814, 0
    %v864 = vsel %vm193, %v815, 0
    %v867 = vsel %vm193, %v816, 0
    %869 = vmatprep.subr.mxu0 0.0
    %870 = vmatpush1.msra.mxu0 %v817
    %871 = vmatprep.subr.mxu0 0.0
    %872 = vmatpush1.msra.mxu0 %v818
    %873 = vmatprep.subr.mxu0 0.0
    %874 = vmatpush1.msra.mxu0 %v819
    %875 = vmatprep.subr.mxu0 0.0
    %876 = vmatpush1.msra.mxu0 %v820
    %877 = vmatprep.subr.mxu0 0.0
    %878 = vmatpush1.msra.mxu0 0.0
    %879 = vmatprep.subr.mxu0 0.0
    %880 = vmatpush1.msra.mxu0 0.0
    %881 = vmatprep.subr.mxu0 0.0
    %882 = vmatpush1.msra.mxu0 0.0
    %883 = vmatprep.subr.mxu0 0.0
    %884 = vmatpush1.msra.mxu0 0.0
    %885 = vmatprep.subr.mxu0 0.0
    %886 = vmatpush1.msra.mxu0 0.0
    %887 = vmatprep.subr.mxu0 0.0
    %888 = vmatpush1.msra.mxu0 0.0
    %889 = vmatprep.subr.mxu0 0.0
    %890 = vmatpush1.msra.mxu0 0.0
    %891 = vmatprep.subr.mxu0 0.0
    %892 = vmatpush1.msra.mxu0 0.0
    %893 = vmatprep.subr.mxu0 0.0
    %894 = vmatpush1.msra.mxu0 0.0
    %895 = vmatprep.subr.mxu0 0.0
    %896 = vmatpush1.msra.mxu0 0.0
    %897 = vmatprep.subr.mxu0 0.0
    %898 = vmatpush1.msra.mxu0 0.0
    %899 = vmatprep.subr.mxu0 0.0
    %900 = vmatpush1.msra.mxu0 0.0
    %901 = vmatprep.subr.mxu0 0.0
    %902 = vmatpush1.msra.mxu0 0.0
    %903 = vmatprep.subr.mxu0 0.0
    %904 = vmatpush1.msra.mxu0 0.0
    %905 = vmatprep.subr.mxu0 0.0
    %906 = vmatpush1.msra.mxu0 0.0
    %907 = vmatprep.subr.mxu0 0.0
    %908 = vmatpush1.msra.mxu0 0.0
    %909 = vmatprep.subr.mxu0 0.0
    %910 = vmatpush1.msra.mxu0 0.0
    %911 = vmatprep.subr.mxu0 0.0
    %912 = vmatpush1.msra.mxu0 0.0
    %913 = vmatprep.subr.mxu0 0.0
    %914 = vmatpush1.msra.mxu0 0.0
    %915 = vmatprep.subr.mxu0 0.0
    %916 = vmatpush1.msra.mxu0 0.0
    %917 = vmatprep.subr.mxu0 0.0
    %918 = vmatpush1.msra.mxu0 0.0
    %919 = vmatprep.subr.mxu0 0.0
    %920 = vmatpush1.msra.mxu0 0.0
    %921 = vmatprep.subr.mxu0 0.0
    %922 = vmatpush1.msra.mxu0 0.0
    %923 = vmatprep.subr.mxu0 0.0
    %924 = vmatpush1.msra.mxu0 0.0
    %925 = vmatprep.subr.mxu0 0.0
    %926 = vmatpush1.msra.mxu0 0.0
    %927 = vmatprep.subr.mxu0 0.0
    %928 = vmatpush1.msra.mxu0 0.0
    %929 = vmatprep.subr.mxu0 0.0
    %930 = vmatpush1.msra.mxu0 0.0
    %931 = vmatprep.subr.mxu0 0.0
    %932 = vmatpush1.msra.mxu0 0.0
    %933 = vmatprep.mubr.f32.mxu0 0.0
    %934 = vmatmul.mubr.f32.gmra.mrb[0].mxu0 %v822
    %v935 = vpop.f32.mrb[0].mxu0
    %v936 = vadd.f32 0.0, %v935
    %v937 = vpop.f32.mrb[0].mxu0
    %938 = vmatprep.mubr.f32.mxu0 0.0
    %939 = vmatmul.mubr.f32.gmra.mrb[0].mxu0 %v825
    %v940 = vpop.f32.mrb[0].mxu0
    %v941 = vadd.f32 0.0, %v940
    %v942 = vpop.f32.mrb[0].mxu0
    %943 = vmatprep.mubr.f32.mxu0 0.0
    %944 = vmatmul.mubr.f32.gmra.mrb[0].mxu0 %v828
    %v945 = vpop.f32.mrb[0].mxu0
    %v946 = vadd.f32 0.0, %v945
    %v947 = vpop.f32.mrb[0].mxu0
    %948 = vmatprep.mubr.f32.mxu0 0.0
    %949 = vmatmul.mubr.f32.gmra.mrb[0].mxu0 %v831
    %v950 = vpop.f32.mrb[0].mxu0
    %v951 = vadd.f32 0.0, %v950
    %v952 = vpop.f32.mrb[0].mxu0
    %953 = vmatprep.mubr.f32.mxu0 0.0
    %954 = vmatmul.mubr.f32.gmra.mrb[0].mxu0 %v834
    %v955 = vpop.f32.mrb[0].mxu0
    %v956 = vadd.f32 0.0, %v955
    %v957 = vpop.f32.mrb[0].mxu0
    %958 = vmatprep.mubr.f32.mxu0 0.0
    %959 = vmatmul.mubr.f32.gmra.mrb[0].mxu0 %v837
    %v960 = vpop.f32.mrb[0].mxu0
    %v961 = vadd.f32 0.0, %v960
    %v962 = vpop.f32.mrb[0].mxu0
    %963 = vmatprep.mubr.f32.mxu0 0.0
    %964 = vmatmul.mubr.f32.gmra.mrb[0].mxu0 %v840
    %v965 = vpop.f32.mrb[0].mxu0
    %v966 = vadd.f32 0.0, %v965
    %v967 = vpop.f32.mrb[0].mxu0
    %968 = vmatprep.mubr.f32.mxu0 0.0
    %969 = vmatmul.mubr.f32.gmra.mrb[0].mxu0 %v843
    %v970 = vpop.f32.mrb[0].mxu0
    %v971 = vadd.f32 0.0, %v970
    %v972 = vpop.f32.mrb[0].mxu0
    %973 = vmatprep.mubr.f32.mxu0 0.0
    %974 = vmatmul.mubr.f32.gmra.mrb[0].mxu0 %v846
    %v975 = vpop.f32.mrb[0].mxu0
    %v976 = vadd.f32 0.0, %v975
    %v977 = vpop.f32.mrb[0].mxu0
    %978 = vmatprep.mubr.f32.mxu0 0.0
    %979 = vmatmul.mubr.f32.gmra.mrb[0].mxu0 %v849
    %v980 = vpop.f32.mrb[0].mxu0
    %v981 = vadd.f32 0.0, %v980
    %v982 = vpop.f32.mrb[0].mxu0
    %983 = vmatprep.mubr.f32.mxu0 0.0
    %984 = vmatmul.mubr.f32.gmra.mrb[0].mxu0 %v852
    %v985 = vpop.f32.mrb[0].mxu0
    %v986 = vadd.f32 0.0, %v985
    %v987 = vpop.f32.mrb[0].mxu0
    %988 = vmatprep.mubr.f32.mxu0 0.0
    %989 = vmatmul.mubr.f32.gmra.mrb[0].mxu0 %v855
    %v990 = vpop.f32.mrb[0].mxu0
    %v991 = vadd.f32 0.0, %v990
    %v992 = vpop.f32.mrb[0].mxu0
    %993 = vmatprep.mubr.f32.mxu0 0.0
    %994 = vmatmul.mubr.f32.gmra.mrb[0].mxu0 %v858
    %v995 = vpop.f32.mrb[0].mxu0
    %v996 = vadd.f32 0.0, %v995
    %v997 = vpop.f32.mrb[0].mxu0
    %998 = vmatprep.mubr.f32.mxu0 0.0
    %999 = vmatmul.mubr.f32.gmra.mrb[0].mxu0 %v861
    %v1000 = vpop.f32.mrb[0].mxu0
    %v1001 = vadd.f32 0.0, %v1000
    %v1002 = vpop.f32.mrb[0].mxu0
    %1003 = vmatprep.mubr.f32.mxu0 0.0
    %1004 = vmatmul.mubr.f32.gmra.mrb[0].mxu0 %v864
    %v1005 = vpop.f32.mrb[0].mxu0
    %v1006 = vadd.f32 0.0, %v1005
    %v1007 = vpop.f32.mrb[0].mxu0
    %1008 = vmatprep.mubr.f32.mxu0 0.0
    %1009 = vmatmul.mubr.f32.gmra.mrb[0].mxu0 %v867
    %v1010 = vpop.f32.mrb[0].mxu0
    %v1011 = vadd.f32 0.0, %v1010
    %v1012 = vpop.f32.mrb[0].mxu0
    %1013 = vdwg.mxu0
    %v1014 = vmul.f32 %v936, 0.35355338
    %v1015 = vmul.f32 %v941, 0.35355338
    %v1016 = vmul.f32 %v946, 0.35355338
    %v1017 = vmul.f32 %v951, 0.35355338
    %v1018 = vmul.f32 %v956, 0.35355338
    %v1019 = vmul.f32 %v961, 0.35355338
    %v1020 = vmul.f32 %v966, 0.35355338
    %v1021 = vmul.f32 %v971, 0.35355338
    %v1022 = vmul.f32 %v976, 0.35355338
    %v1023 = vmul.f32 %v981, 0.35355338
    %v1024 = vmul.f32 %v986, 0.35355338
    %v1025 = vmul.f32 %v991, 0.35355338
    %v1026 = vmul.f32 %v996, 0.35355338
    %v1027 = vmul.f32 %v1001, 0.35355338
    %v1028 = vmul.f32 %v1006, 0.35355338
    %v1029 = vmul.f32 %v1011, 0.35355338
    %vm1030 = vcmp.gt.f32.partialorder %v83, 0.0
    %vm1031 = vcmp.gt.f32.partialorder %v90, 0.0
    %vm1032 = vcmp.gt.f32.partialorder %v97, 0.0
    %vm1033 = vcmp.gt.f32.partialorder %v104, 0.0
    %vm1034 = vcmp.gt.f32.partialorder %v111, 0.0
    %vm1035 = vcmp.gt.f32.partialorder %v118, 0.0
    %vm1036 = vcmp.gt.f32.partialorder %v125, 0.0
    %vm1037 = vcmp.gt.f32.partialorder %v132, 0.0
    %vm1038 = vcmp.gt.f32.partialorder %v139, 0.0
    %vm1039 = vcmp.gt.f32.partialorder %v146, 0.0
    %vm1040 = vcmp.gt.f32.partialorder %v153, 0.0
    %vm1041 = vcmp.gt.f32.partialorder %v160, 0.0
    %vm1042 = vcmp.gt.f32.partialorder %v167, 0.0
    %vm1043 = vcmp.gt.f32.partialorder %v174, 0.0
    %vm1044 = vcmp.gt.f32.partialorder %v181, 0.0
    %vm1045 = vcmp.gt.f32.partialorder %v188, 0.0
    %v1046 = vsel %vm1030, 1, 0
    %v1047 = vsel %vm1031, 1, 0
    %v1048 = vsel %vm1032, 1, 0
    %v1049 = vsel %vm1033, 1, 0
    %v1050 = vsel %vm1034, 1, 0
    %v1051 = vsel %vm1035, 1, 0
    %v1052 = vsel %vm1036, 1, 0
    %v1053 = vsel %vm1037, 1, 0
    %v1054 = vsel %vm1038, 1, 0
    %v1055 = vsel %vm1039, 1, 0
    %v1056 = vsel %vm1040, 1, 0
    %v1057 = vsel %vm1041, 1, 0
    %v1058 = vsel %vm1042, 1, 0
    %v1059 = vsel %vm1043, 1, 0
    %v1060 = vsel %vm1044, 1, 0
    %v1061 = vsel %vm1045, 1, 0
    %vm1062 = vcmp.eq.s32.totalorder %v1046, 1
    %vm1063 = vcmp.eq.s32.totalorder %v1047, 1
    %vm1064 = vcmp.eq.s32.totalorder %v1048, 1
    %vm1065 = vcmp.eq.s32.totalorder %v1049, 1
    %vm1066 = vcmp.eq.s32.totalorder %v1050, 1
    %vm1067 = vcmp.eq.s32.totalorder %v1051, 1
    %vm1068 = vcmp.eq.s32.totalorder %v1052, 1
    %vm1069 = vcmp.eq.s32.totalorder %v1053, 1
    %vm1070 = vcmp.eq.s32.totalorder %v1054, 1
    %vm1071 = vcmp.eq.s32.totalorder %v1055, 1
    %vm1072 = vcmp.eq.s32.totalorder %v1056, 1
    %vm1073 = vcmp.eq.s32.totalorder %v1057, 1
    %vm1074 = vcmp.eq.s32.totalorder %v1058, 1
    %vm1075 = vcmp.eq.s32.totalorder %v1059, 1
    %vm1076 = vcmp.eq.s32.totalorder %v1060, 1
    %vm1077 = vcmp.eq.s32.totalorder %v1061, 1
    %v1078 = vsel %vm1062, %v1014, -3.4028235e+38
    %v1079 = vsel %vm1063, %v1015, -3.4028235e+38
    %v1080 = vsel %vm1064, %v1016, -3.4028235e+38
    %v1081 = vsel %vm1065, %v1017, -3.4028235e+38
    %v1082 = vsel %vm1066, %v1018, -3.4028235e+38
    %v1083 = vsel %vm1067, %v1019, -3.4028235e+38
    %v1084 = vsel %vm1068, %v1020, -3.4028235e+38
    %v1085 = vsel %vm1069, %v1021, -3.4028235e+38
    %v1086 = vsel %vm1070, %v1022, -3.4028235e+38
    %v1087 = vsel %vm1071, %v1023, -3.4028235e+38
    %v1088 = vsel %vm1072, %v1024, -3.4028235e+38
    %v1089 = vsel %vm1073, %v1025, -3.4028235e+38
    %v1090 = vsel %vm1074, %v1026, -3.4028235e+38
    %v1091 = vsel %vm1075, %v1027, -3.4028235e+38
    %v1092 = vsel %vm1076, %v1028, -3.4028235e+38
    %v1093 = vsel %vm1077, %v1029, -3.4028235e+38
    %v1094 = vsel %vm193, %v1078, -inf
    %v1095 = vrot.slane %v1094, 4
    %v1096 = vmax.f32 %v1094, %v1095
    %v1097 = vrot.slane %v1096, 2
    %v1098 = vmax.f32 %v1096, %v1097
    %v1099 = vrot.slane %v1098, 1
    %v1100 = vmax.f32 %v1098, %v1099
    %v1101 = vsel %vm193, %v1079, -inf
    %v1102 = vrot.slane %v1101, 4
    %v1103 = vmax.f32 %v1101, %v1102
    %v1104 = vrot.slane %v1103, 2
    %v1105 = vmax.f32 %v1103, %v1104
    %v1106 = vrot.slane %v1105, 1
    %v1107 = vmax.f32 %v1105, %v1106
    %v1108 = vsel %vm193, %v1080, -inf
    %v1109 = vrot.slane %v1108, 4
    %v1110 = vmax.f32 %v1108, %v1109
    %v1111 = vrot.slane %v1110, 2
    %v1112 = vmax.f32 %v1110, %v1111
    %v1113 = vrot.slane %v1112, 1
    %v1114 = vmax.f32 %v1112, %v1113
    %v1115 = vsel %vm193, %v1081, -inf
    %v1116 = vrot.slane %v1115, 4
    %v1117 = vmax.f32 %v1115, %v1116
    %v1118 = vrot.slane %v1117, 2
    %v1119 = vmax.f32 %v1117, %v1118
    %v1120 = vrot.slane %v1119, 1
    %v1121 = vmax.f32 %v1119, %v1120
    %v1122 = vsel %vm193, %v1082, -inf
    %v1123 = vrot.slane %v1122, 4
    %v1124 = vmax.f32 %v1122, %v1123
    %v1125 = vrot.slane %v1124, 2
    %v1126 = vmax.f32 %v1124, %v1125
    %v1127 = vrot.slane %v1126, 1
    %v1128 = vmax.f32 %v1126, %v1127
    %v1129 = vsel %vm193, %v1083, -inf
    %v1130 = vrot.slane %v1129, 4
    %v1131 = vmax.f32 %v1129, %v1130
    %v1132 = vrot.slane %v1131, 2
    %v1133 = vmax.f32 %v1131, %v1132
    %v1134 = vrot.slane %v1133, 1
    %v1135 = vmax.f32 %v1133, %v1134
    %v1136 = vsel %vm193, %v1084, -inf
    %v1137 = vrot.slane %v1136, 4
    %v1138 = vmax.f32 %v1136, %v1137
    %v1139 = vrot.slane %v1138, 2
    %v1140 = vmax.f32 %v1138, %v1139
    %v1141 = vrot.slane %v1140, 1
    %v1142 = vmax.f32 %v1140, %v1141
    %v1143 = vsel %vm193, %v1085, -inf
    %v1144 = vrot.slane %v1143, 4
    %v1145 = vmax.f32 %v1143, %v1144
    %v1146 = vrot.slane %v1145, 2
    %v1147 = vmax.f32 %v1145, %v1146
    %v1148 = vrot.slane %v1147, 1
    %v1149 = vmax.f32 %v1147, %v1148
    %v1150 = vsel %vm193, %v1086, -inf
    %v1151 = vrot.slane %v1150, 4
    %v1152 = vmax.f32 %v1150, %v1151
    %v1153 = vrot.slane %v1152, 2
    %v1154 = vmax.f32 %v1152, %v1153
    %v1155 = vrot.slane %v1154, 1
    %v1156 = vmax.f32 %v1154, %v1155
    %v1157 = vsel %vm193, %v1087, -inf
    %v1158 = vrot.slane %v1157, 4
    %v1159 = vmax.f32 %v1157, %v1158
    %v1160 = vrot.slane %v1159, 2
    %v1161 = vmax.f32 %v1159, %v1160
    %v1162 = vrot.slane %v1161, 1
    %v1163 = vmax.f32 %v1161, %v1162
    %v1164 = vsel %vm193, %v1088, -inf
    %v1165 = vrot.slane %v1164, 4
    %v1166 = vmax.f32 %v1164, %v1165
    %v1167 = vrot.slane %v1166, 2
    %v1168 = vmax.f32 %v1166, %v1167
    %v1169 = vrot.slane %v1168, 1
    %v1170 = vmax.f32 %v1168, %v1169
    %v1171 = vsel %vm193, %v1089, -inf
    %v1172 = vrot.slane %v1171, 4
    %v1173 = vmax.f32 %v1171, %v1172
    %v1174 = vrot.slane %v1173, 2
    %v1175 = vmax.f32 %v1173, %v1174
    %v1176 = vrot.slane %v1175, 1
    %v1177 = vmax.f32 %v1175, %v1176
    %v1178 = vsel %vm193, %v1090, -inf
    %v1179 = vrot.slane %v1178, 4
    %v1180 = vmax.f32 %v1178, %v1179
    %v1181 = vrot.slane %v1180, 2
    %v1182 = vmax.f32 %v1180, %v1181
    %v1183 = vrot.slane %v1182, 1
    %v1184 = vmax.f32 %v1182, %v1183
    %v1185 = vsel %vm193, %v1091, -inf
    %v1186 = vrot.slane %v1185, 4
    %v1187 = vmax.f32 %v1185, %v1186
    %v1188 = vrot.slane %v1187, 2
    %v1189 = vmax.f32 %v1187, %v1188
    %v1190 = vrot.slane %v1189, 1
    %v1191 = vmax.f32 %v1189, %v1190
    %v1192 = vsel %vm193, %v1092, -inf
    %v1193 = vrot.slane %v1192, 4
    %v1194 = vmax.f32 %v1192, %v1193
    %v1195 = vrot.slane %v1194, 2
    %v1196 = vmax.f32 %v1194, %v1195
    %v1197 = vrot.slane %v1196, 1
    %v1198 = vmax.f32 %v1196, %v1197
    %v1199 = vsel %vm193, %v1093, -inf
    %v1200 = vrot.slane %v1199, 4
    %v1201 = vmax.f32 %v1199, %v1200
    %v1202 = vrot.slane %v1201, 2
    %v1203 = vmax.f32 %v1201, %v1202
    %v1204 = vrot.slane %v1203, 1
    %v1205 = vmax.f32 %v1203, %v1204
    %v1206 = vsub.f32 %v1078, %v1100
    %v1207 = vsub.f32 %v1079, %v1107
    %v1208 = vsub.f32 %v1080, %v1114
    %v1209 = vsub.f32 %v1081, %v1121
    %v1210 = vsub.f32 %v1082, %v1128
    %v1211 = vsub.f32 %v1083, %v1135
    %v1212 = vsub.f32 %v1084, %v1142
    %v1213 = vsub.f32 %v1085, %v1149
    %v1214 = vsub.f32 %v1086, %v1156
    %v1215 = vsub.f32 %v1087, %v1163
    %v1216 = vsub.f32 %v1088, %v1170
    %v1217 = vsub.f32 %v1089, %v1177
    %v1218 = vsub.f32 %v1090, %v1184
    %v1219 = vsub.f32 %v1091, %v1191
    %v1220 = vsub.f32 %v1092, %v1198
    %v1221 = vsub.f32 %v1093, %v1205
    %v1222 = vmul.f32 %v1206, 1.442695
    %v1223 = vpow.pop %v1222
    %v1224 = vmul.f32 %v1207, 1.442695
    %v1225 = vpow.pop %v1224
    %v1226 = vmul.f32 %v1208, 1.442695
    %v1227 = vpow.pop %v1226
    %v1228 = vmul.f32 %v1209, 1.442695
    %v1229 = vpow.pop %v1228
    %v1230 = vmul.f32 %v1210, 1.442695
    %v1231 = vpow.pop %v1230
    %v1232 = vmul.f32 %v1211, 1.442695
    %v1233 = vpow.pop %v1232
    %v1234 = vmul.f32 %v1212, 1.442695
    %v1235 = vpow.pop %v1234
    %v1236 = vmul.f32 %v1213, 1.442695
    %v1237 = vpow.pop %v1236
    %v1238 = vmul.f32 %v1214, 1.442695
    %v1239 = vpow.pop %v1238
    %v1240 = vmul.f32 %v1215, 1.442695
    %v1241 = vpow.pop %v1240
    %v1242 = vmul.f32 %v1216, 1.442695
    %v1243 = vpow.pop %v1242
    %v1244 = vmul.f32 %v1217, 1.442695
    %v1245 = vpow.pop %v1244
    %v1246 = vmul.f32 %v1218, 1.442695
    %v1247 = vpow.pop %v1246
    %v1248 = vmul.f32 %v1219, 1.442695
    %v1249 = vpow.pop %v1248
    %v1250 = vmul.f32 %v1220, 1.442695
    %v1251 = vpow.pop %v1250
    %v1252 = vmul.f32 %v1221, 1.442695
    %v1253 = vpow.pop %v1252
    %v1254 = vsel %vm193, %v1223, 0.0
    %v1255 = vrot.slane %v1254, 4
    %v1256 = vadd.f32 %v1254, %v1255
    %v1257 = vrot.slane %v1256, 2
    %v1258 = vadd.f32 %v1256, %v1257
    %v1259 = vrot.slane %v1258, 1
    %v1260 = vadd.f32 %v1258, %v1259
    %v1261 = vsel %vm193, %v1225, 0.0
    %v1262 = vrot.slane %v1261, 4
    %v1263 = vadd.f32 %v1261, %v1262
    %v1264 = vrot.slane %v1263, 2
    %v1265 = vadd.f32 %v1263, %v1264
    %v1266 = vrot.slane %v1265, 1
    %v1267 = vadd.f32 %v1265, %v1266
    %v1268 = vsel %vm193, %v1227, 0.0
    %v1269 = vrot.slane %v1268, 4
    %v1270 = vadd.f32 %v1268, %v1269
    %v1271 = vrot.slane %v1270, 2
    %v1272 = vadd.f32 %v1270, %v1271
    %v1273 = vrot.slane %v1272, 1
    %v1274 = vadd.f32 %v1272, %v1273
    %v1275 = vsel %vm193, %v1229, 0.0
    %v1276 = vrot.slane %v1275, 4
    %v1277 = vadd.f32 %v1275, %v1276
    %v1278 = vrot.slane %v1277, 2
    %v1279 = vadd.f32 %v1277, %v1278
    %v1280 = vrot.slane %v1279, 1
    %v1281 = vadd.f32 %v1279, %v1280
    %v1282 = vsel %vm193, %v1231, 0.0
    %v1283 = vrot.slane %v1282, 4
    %v1284 = vadd.f32 %v1282, %v1283
    %v1285 = vrot.slane %v1284, 2
    %v1286 = vadd.f32 %v1284, %v1285
    %v1287 = vrot.slane %v1286, 1
    %v1288 = vadd.f32 %v1286, %v1287
    %v1289 = vsel %vm193, %v1233, 0.0
    %v1290 = vrot.slane %v1289, 4
    %v1291 = vadd.f32 %v1289, %v1290
    %v1292 = vrot.slane %v1291, 2
    %v1293 = vadd.f32 %v1291, %v1292
    %v1294 = vrot.slane %v1293, 1
    %v1295 = vadd.f32 %v1293, %v1294
    %v1296 = vsel %vm193, %v1235, 0.0
    %v1297 = vrot.slane %v1296, 4
    %v1298 = vadd.f32 %v1296, %v1297
    %v1299 = vrot.slane %v1298, 2
    %v1300 = vadd.f32 %v1298, %v1299
    %v1301 = vrot.slane %v1300, 1
    %v1302 = vadd.f32 %v1300, %v1301
    %v1303 = vsel %vm193, %v1237, 0.0
    %v1304 = vrot.slane %v1303, 4
    %v1305 = vadd.f32 %v1303, %v1304
    %v1306 = vrot.slane %v1305, 2
    %v1307 = vadd.f32 %v1305, %v1306
    %v1308 = vrot.slane %v1307, 1
    %v1309 = vadd.f32 %v1307, %v1308
    %v1310 = vsel %vm193, %v1239, 0.0
    %v1311 = vrot.slane %v1310, 4
    %v1312 = vadd.f32 %v1310, %v1311
    %v1313 = vrot.slane %v1312, 2
    %v1314 = vadd.f32 %v1312, %v1313
    %v1315 = vrot.slane %v1314, 1
    %v1316 = vadd.f32 %v1314, %v1315
    %v1317 = vsel %vm193, %v1241, 0.0
    %v1318 = vrot.slane %v1317, 4
    %v1319 = vadd.f32 %v1317, %v1318
    %v1320 = vrot.slane %v1319, 2
    %v1321 = vadd.f32 %v1319, %v1320
    %v1322 = vrot.slane %v1321, 1
    %v1323 = vadd.f32 %v1321, %v1322
    %v1324 = vsel %vm193, %v1243, 0.0
    %v1325 = vrot.slane %v1324, 4
    %v1326 = vadd.f32 %v1324, %v1325
    %v1327 = vrot.slane %v1326, 2
    %v1328 = vadd.f32 %v1326, %v1327
    %v1329 = vrot.slane %v1328, 1
    %v1330 = vadd.f32 %v1328, %v1329
    %v1331 = vsel %vm193, %v1245, 0.0
    %v1332 = vrot.slane %v1331, 4
    %v1333 = vadd.f32 %v1331, %v1332
    %v1334 = vrot.slane %v1333, 2
    %v1335 = vadd.f32 %v1333, %v1334
    %v1336 = vrot.slane %v1335, 1
    %v1337 = vadd.f32 %v1335, %v1336
    %v1338 = vsel %vm193, %v1247, 0.0
    %v1339 = vrot.slane %v1338, 4
    %v1340 = vadd.f32 %v1338, %v1339
    %v1341 = vrot.slane %v1340, 2
    %v1342 = vadd.f32 %v1340, %v1341
    %v1343 = vrot.slane %v1342, 1
    %v1344 = vadd.f32 %v1342, %v1343
    %v1345 = vsel %vm193, %v1249, 0.0
    %v1346 = vrot.slane %v1345, 4
    %v1347 = vadd.f32 %v1345, %v1346
    %v1348 = vrot.slane %v1347, 2
    %v1349 = vadd.f32 %v1347, %v1348
    %v1350 = vrot.slane %v1349, 1
    %v1351 = vadd.f32 %v1349, %v1350
    %v1352 = vsel %vm193, %v1251, 0.0
    %v1353 = vrot.slane %v1352, 4
    %v1354 = vadd.f32 %v1352, %v1353
    %v1355 = vrot.slane %v1354, 2
    %v1356 = vadd.f32 %v1354, %v1355
    %v1357 = vrot.slane %v1356, 1
    %v1358 = vadd.f32 %v1356, %v1357
    %v1359 = vsel %vm193, %v1253, 0.0
    %v1360 = vrot.slane %v1359, 4
    %v1361 = vadd.f32 %v1359, %v1360
    %v1362 = vrot.slane %v1361, 2
    %v1363 = vadd.f32 %v1361, %v1362
    %v1364 = vrot.slane %v1363, 1
    %v1365 = vadd.f32 %v1363, %v1364
    %v1366 = vmul.f32 %v83, %v1223
    %v1367 = vmul.f32 %v90, %v1225
    %v1368 = vmul.f32 %v97, %v1227
    %v1369 = vmul.f32 %v104, %v1229
    %v1370 = vmul.f32 %v111, %v1231
    %v1371 = vmul.f32 %v118, %v1233
    %v1372 = vmul.f32 %v125, %v1235
    %v1373 = vmul.f32 %v132, %v1237
    %v1374 = vmul.f32 %v139, %v1239
    %v1375 = vmul.f32 %v146, %v1241
    %v1376 = vmul.f32 %v153, %v1243
    %v1377 = vmul.f32 %v160, %v1245
    %v1378 = vmul.f32 %v167, %v1247
    %v1379 = vmul.f32 %v174, %v1249
    %v1380 = vmul.f32 %v181, %v1251
    %v1381 = vmul.f32 %v188, %v1253
    %v1382 = vrcp.pop %v1260
    %v1383 = vrcp.pop %v1267
    %v1384 = vrcp.pop %v1274
    %v1385 = vrcp.pop %v1281
    %v1386 = vrcp.pop %v1288
    %v1387 = vrcp.pop %v1295
    %v1388 = vrcp.pop %v1302
    %v1389 = vrcp.pop %v1309
    %v1390 = vrcp.pop %v1316
    %v1391 = vrcp.pop %v1323
    %v1392 = vrcp.pop %v1330
    %v1393 = vrcp.pop %v1337
    %v1394 = vrcp.pop %v1344
    %v1395 = vrcp.pop %v1351
    %v1396 = vrcp.pop %v1358
    %v1397 = vrcp.pop %v1365
    %v1398 = vmul.f32 %v1366, %v1382
    %v1399 = vmul.f32 %v1367, %v1383
    %v1400 = vmul.f32 %v1368, %v1384
    %v1401 = vmul.f32 %v1369, %v1385
    %v1402 = vmul.f32 %v1370, %v1386
    %v1403 = vmul.f32 %v1371, %v1387
    %v1404 = vmul.f32 %v1372, %v1388
    %v1405 = vmul.f32 %v1373, %v1389
    %v1406 = vmul.f32 %v1374, %v1390
    %v1407 = vmul.f32 %v1375, %v1391
    %v1408 = vmul.f32 %v1376, %v1392
    %v1409 = vmul.f32 %v1377, %v1393
    %v1410 = vmul.f32 %v1378, %v1394
    %v1411 = vmul.f32 %v1379, %v1395
    %v1412 = vmul.f32 %v1380, %v1396
    %v1413 = vmul.f32 %v1381, %v1397
    %v1414 = vmul.f32 %v1398, %v543
    %v1415 = vmul.f32 %v1399, %v548
    %v1416 = vmul.f32 %v1400, %v553
    %v1417 = vmul.f32 %v1401, %v558
    %v1418 = vmul.f32 %v1402, %v563
    %v1419 = vmul.f32 %v1403, %v568
    %v1420 = vmul.f32 %v1404, %v573
    %v1421 = vmul.f32 %v1405, %v578
    %v1422 = vmul.f32 %v1406, %v583
    %v1423 = vmul.f32 %v1407, %v588
    %v1424 = vmul.f32 %v1408, %v593
    %v1425 = vmul.f32 %v1409, %v598
    %v1426 = vmul.f32 %v1410, %v603
    %v1427 = vmul.f32 %v1411, %v608
    %v1428 = vmul.f32 %v1412, %v613
    %v1429 = vmul.f32 %v1413, %v618
    %v1430 = vsel %vm193, %v1414, 0.0
    %v1431 = vrot.slane %v1430, 4
    %v1432 = vadd.f32 %v1430, %v1431
    %v1433 = vrot.slane %v1432, 2
    %v1434 = vadd.f32 %v1432, %v1433
    %v1435 = vrot.slane %v1434, 1
    %v1436 = vadd.f32 %v1434, %v1435
    %v1437 = vsel %vm193, %v1415, 0.0
    %v1438 = vrot.slane %v1437, 4
    %v1439 = vadd.f32 %v1437, %v1438
    %v1440 = vrot.slane %v1439, 2
    %v1441 = vadd.f32 %v1439, %v1440
    %v1442 = vrot.slane %v1441, 1
    %v1443 = vadd.f32 %v1441, %v1442
    %v1444 = vsel %vm193, %v1416, 0.0
    %v1445 = vrot.slane %v1444, 4
    %v1446 = vadd.f32 %v1444, %v1445
    %v1447 = vrot.slane %v1446, 2
    %v1448 = vadd.f32 %v1446, %v1447
    %v1449 = vrot.slane %v1448, 1
    %v1450 = vadd.f32 %v1448, %v1449
    %v1451 = vsel %vm193, %v1417, 0.0
    %v1452 = vrot.slane %v1451, 4
    %v1453 = vadd.f32 %v1451, %v1452
    %v1454 = vrot.slane %v1453, 2
    %v1455 = vadd.f32 %v1453, %v1454
    %v1456 = vrot.slane %v1455, 1
    %v1457 = vadd.f32 %v1455, %v1456
    %v1458 = vsel %vm193, %v1418, 0.0
    %v1459 = vrot.slane %v1458, 4
    %v1460 = vadd.f32 %v1458, %v1459
    %v1461 = vrot.slane %v1460, 2
    %v1462 = vadd.f32 %v1460, %v1461
    %v1463 = vrot.slane %v1462, 1
    %v1464 = vadd.f32 %v1462, %v1463
    %v1465 = vsel %vm193, %v1419, 0.0
    %v1466 = vrot.slane %v1465, 4
    %v1467 = vadd.f32 %v1465, %v1466
    %v1468 = vrot.slane %v1467, 2
    %v1469 = vadd.f32 %v1467, %v1468
    %v1470 = vrot.slane %v1469, 1
    %v1471 = vadd.f32 %v1469, %v1470
    %v1472 = vsel %vm193, %v1420, 0.0
    %v1473 = vrot.slane %v1472, 4
    %v1474 = vadd.f32 %v1472, %v1473
    %v1475 = vrot.slane %v1474, 2
    %v1476 = vadd.f32 %v1474, %v1475
    %v1477 = vrot.slane %v1476, 1
    %v1478 = vadd.f32 %v1476, %v1477
    %v1479 = vsel %vm193, %v1421, 0.0
    %v1480 = vrot.slane %v1479, 4
    %v1481 = vadd.f32 %v1479, %v1480
    %v1482 = vrot.slane %v1481, 2
    %v1483 = vadd.f32 %v1481, %v1482
    %v1484 = vrot.slane %v1483, 1
    %v1485 = vadd.f32 %v1483, %v1484
    %v1486 = vsel %vm193, %v1422, 0.0
    %v1487 = vrot.slane %v1486, 4
    %v1488 = vadd.f32 %v1486, %v1487
    %v1489 = vrot.slane %v1488, 2
    %v1490 = vadd.f32 %v1488, %v1489
    %v1491 = vrot.slane %v1490, 1
    %v1492 = vadd.f32 %v1490, %v1491
    %v1493 = vsel %vm193, %v1423, 0.0
    %v1494 = vrot.slane %v1493, 4
    %v1495 = vadd.f32 %v1493, %v1494
    %v1496 = vrot.slane %v1495, 2
    %v1497 = vadd.f32 %v1495, %v1496
    %v1498 = vrot.slane %v1497, 1
    %v1499 = vadd.f32 %v1497, %v1498
    %v1500 = vsel %vm193, %v1424, 0.0
    %v1501 = vrot.slane %v1500, 4
    %v1502 = vadd.f32 %v1500, %v1501
    %v1503 = vrot.slane %v1502, 2
    %v1504 = vadd.f32 %v1502, %v1503
    %v1505 = vrot.slane %v1504, 1
    %v1506 = vadd.f32 %v1504, %v1505
    %v1507 = vsel %vm193, %v1425, 0.0
    %v1508 = vrot.slane %v1507, 4
    %v1509 = vadd.f32 %v1507, %v1508
    %v1510 = vrot.slane %v1509, 2
    %v1511 = vadd.f32 %v1509, %v1510
    %v1512 = vrot.slane %v1511, 1
    %v1513 = vadd.f32 %v1511, %v1512
    %v1514 = vsel %vm193, %v1426, 0.0
    %v1515 = vrot.slane %v1514, 4
    %v1516 = vadd.f32 %v1514, %v1515
    %v1517 = vrot.slane %v1516, 2
    %v1518 = vadd.f32 %v1516, %v1517
    %v1519 = vrot.slane %v1518, 1
    %v1520 = vadd.f32 %v1518, %v1519
    %v1521 = vsel %vm193, %v1427, 0.0
    %v1522 = vrot.slane %v1521, 4
    %v1523 = vadd.f32 %v1521, %v1522
    %v1524 = vrot.slane %v1523, 2
    %v1525 = vadd.f32 %v1523, %v1524
    %v1526 = vrot.slane %v1525, 1
    %v1527 = vadd.f32 %v1525, %v1526
    %v1528 = vsel %vm193, %v1428, 0.0
    %v1529 = vrot.slane %v1528, 4
    %v1530 = vadd.f32 %v1528, %v1529
    %v1531 = vrot.slane %v1530, 2
    %v1532 = vadd.f32 %v1530, %v1531
    %v1533 = vrot.slane %v1532, 1
    %v1534 = vadd.f32 %v1532, %v1533
    %v1535 = vsel %vm193, %v1429, 0.0
    %v1536 = vrot.slane %v1535, 4
    %v1537 = vadd.f32 %v1535, %v1536
    %v1538 = vrot.slane %v1537, 2
    %v1539 = vadd.f32 %v1537, %v1538
    %v1540 = vrot.slane %v1539, 1
    %v1541 = vadd.f32 %v1539, %v1540
    %v1542 = vld [vmem:[%s8] sm:$0xff]
    %v1543 = vld [vmem:[%s8 + $0x8] sm:$0xff]
    %v1544 = vld [vmem:[%s8 + $0x10] sm:$0xff]
    %v1545 = vld [vmem:[%s8 + $0x18] sm:$0xff]
    %vm1562 = vcmask 1041409
    %v1563 = vsel %vm1562, %v1443, %v1436
    %vm1564 = vcmask 1042434
    %v1565 = vsel %vm1564, %v1450, %v1563
    %vm1566 = vcmask 1043459
    %v1567 = vsel %vm1566, %v1457, %v1565
    %vm1568 = vcmask 1044484
    %v1569 = vsel %vm1568, %v1464, %v1567
    %vm1570 = vcmask 1045509
    %v1571 = vsel %vm1570, %v1471, %v1569
    %vm1572 = vcmask 1046534
    %v1573 = vsel %vm1572, %v1478, %v1571
    %vm1574 = vcmask 1047559
    %v1575 = vsel %vm1574, %v1485, %v1573
    %v1576 = vsel %vm1562, %v1499, %v1492
    %v1577 = vsel %vm1564, %v1506, %v1576
    %v1578 = vsel %vm1566, %v1513, %v1577
    %v1579 = vsel %vm1568, %v1520, %v1578
    %v1580 = vsel %vm1570, %v1527, %v1579
    %v1581 = vsel %vm1572, %v1534, %v1580
    %v1582 = vsel %vm1574, %v1541, %v1581
    %v1583 = vsel %vm193, %v1575, 0
    %v1585 = vsel %vm193, %v1582, 0
    %1587 = vmatprep.subr.mxu0 0.0
    %1588 = vmatpush1.msra.mxu0 %v1542
    %1589 = vmatprep.subr.mxu0 0.0
    %1590 = vmatpush1.msra.mxu0 %v1543
    %1591 = vmatprep.subr.mxu0 0.0
    %1592 = vmatpush1.msra.mxu0 %v1544
    %1593 = vmatprep.subr.mxu0 0.0
    %1594 = vmatpush1.msra.mxu0 %v1545
    %1595 = vmatprep.subr.mxu0 0.0
    %1596 = vmatpush1.msra.mxu0 0.0
    %1597 = vmatprep.subr.mxu0 0.0
    %1598 = vmatpush1.msra.mxu0 0.0
    %1599 = vmatprep.subr.mxu0 0.0
    %1600 = vmatpush1.msra.mxu0 0.0
    %1601 = vmatprep.subr.mxu0 0.0
    %1602 = vmatpush1.msra.mxu0 0.0
    %1603 = vmatprep.subr.mxu0 0.0
    %1604 = vmatpush1.msra.mxu0 0.0
    %1605 = vmatprep.subr.mxu0 0.0
    %1606 = vmatpush1.msra.mxu0 0.0
    %1607 = vmatprep.subr.mxu0 0.0
    %1608 = vmatpush1.msra.mxu0 0.0
    %1609 = vmatprep.subr.mxu0 0.0
    %1610 = vmatpush1.msra.mxu0 0.0
    %1611 = vmatprep.subr.mxu0 0.0
    %1612 = vmatpush1.msra.mxu0 0.0
    %1613 = vmatprep.subr.mxu0 0.0
    %1614 = vmatpush1.msra.mxu0 0.0
    %1615 = vmatprep.subr.mxu0 0.0
    %1616 = vmatpush1.msra.mxu0 0.0
    %1617 = vmatprep.subr.mxu0 0.0
    %1618 = vmatpush1.msra.mxu0 0.0
    %1619 = vmatprep.subr.mxu0 0.0
    %1620 = vmatpush1.msra.mxu0 0.0
    %1621 = vmatprep.subr.mxu0 0.0
    %1622 = vmatpush1.msra.mxu0 0.0
    %1623 = vmatprep.subr.mxu0 0.0
    %1624 = vmatpush1.msra.mxu0 0.0
    %1625 = vmatprep.subr.mxu0 0.0
    %1626 = vmatpush1.msra.mxu0 0.0
    %1627 = vmatprep.subr.mxu0 0.0
    %1628 = vmatpush1.msra.mxu0 0.0
    %1629 = vmatprep.subr.mxu0 0.0
    %1630 = vmatpush1.msra.mxu0 0.0
    %1631 = vmatprep.subr.mxu0 0.0
    %1632 = vmatpush1.msra.mxu0 0.0
    %1633 = vmatprep.subr.mxu0 0.0
    %1634 = vmatpush1.msra.mxu0 0.0
    %1635 = vmatprep.subr.mxu0 0.0
    %1636 = vmatpush1.msra.mxu0 0.0
    %1637 = vmatprep.subr.mxu0 0.0
    %1638 = vmatpush1.msra.mxu0 0.0
    %1639 = vmatprep.subr.mxu0 0.0
    %1640 = vmatpush1.msra.mxu0 0.0
    %1641 = vmatprep.subr.mxu0 0.0
    %1642 = vmatpush1.msra.mxu0 0.0
    %1643 = vmatprep.subr.mxu0 0.0
    %1644 = vmatpush1.msra.mxu0 0.0
    %1645 = vmatprep.subr.mxu0 0.0
    %1646 = vmatpush1.msra.mxu0 0.0
    %1647 = vmatprep.subr.mxu0 0.0
    %1648 = vmatpush1.msra.mxu0 0.0
    %1649 = vmatprep.subr.mxu0 0.0
    %1650 = vmatpush1.msra.mxu0 0.0
    %1651 = vmatprep.mubr.f32.mxu0 0.0
    %1652 = vmatmul.mubr.f32.gmra.mrb[0].mxu0 %v1583
    %v1653 = vpop.f32.mrb[0].mxu0
    %v1654 = vadd.f32 0.0, %v1653
    %v1655 = vpop.f32.mrb[0].mxu0
    %1656 = vmatprep.mubr.f32.mxu0 0.0
    %1657 = vmatmul.mubr.f32.gmra.mrb[0].mxu0 %v1585
    %v1658 = vpop.f32.mrb[0].mxu0
    %v1659 = vadd.f32 0.0, %v1658
    %v1660 = vpop.f32.mrb[0].mxu0
    %1661 = vdwg.mxu0
    %v1662 = vadd.f32 %v57, %v1654
    %v1663 = vadd.f32 %v58, %v1659
    %v1664 = vld [vmem:[%s9] sm:$0x1]
    %v1665 = vld [vmem:[%s10] sm:$0x1]
    %v1666 = vsel %vm193, %v1662, 0.0
    %1667 = vadd.xlane.f32.xlu0 %v1666
    %v1668 = vpop.xlane.xlu0 %1667
    %v1669 = vsel %vm193, %v1663, 0.0
    %1670 = vadd.xlane.f32.xlu0 %v1669
    %v1671 = vpop.xlane.xlu0 %1670
    %v1672 = vrcp.pop 32.0
    %v1673 = vmul.f32 %v1668, %v1672
    %v1674 = vmul.f32 %v1671, %v1672
    %v1675 = vsub.f32 %v1662, %v1673
    %v1676 = vsub.f32 %v1663, %v1674
    %v1677 = vmul.f32 %v1675, %v1675
    %v1678 = vmul.f32 %v1676, %v1676
    %v1679 = vsel %vm193, %v1677, 0.0
    %1680 = vadd.xlane.f32.xlu0 %v1679
    %v1681 = vpop.xlane.xlu0 %1680
    %v1682 = vsel %vm193, %v1678, 0.0
    %1683 = vadd.xlane.f32.xlu0 %v1682
    %v1684 = vpop.xlane.xlu0 %1683
    %v1685 = vrcp.pop 31.0
    %v1686 = vmul.f32 %v1681, %v1685
    %v1687 = vmul.f32 %v1684, %v1685
    %v1688 = vadd.f32 %v1686, 1e-06
    %v1689 = vadd.f32 %v1687, 1e-06
    %v1690 = vrsqrt.pop %v1688
    %v1691 = vmul.f32 %v1688, %v1690
    %vm1692 = vcmp.eq.f32.partialorder %v1688, inf
    %v1693 = vsel %vm1692, %v1688, %v1691
    %vm1694 = vcmp.eq.f32.partialorder %v1688, 0.0
    %v1695 = vand.u32 %v1688, 2147483648
    %v1696 = vsel %vm1694, %v1695, %v1693
    %v1697 = vrsqrt.pop %v1689
    %v1698 = vmul.f32 %v1689, %v1697
    %vm1699 = vcmp.eq.f32.partialorder %v1689, inf
    %v1700 = vsel %vm1699, %v1689, %v1698
    %vm1701 = vcmp.eq.f32.partialorder %v1689, 0.0
    %v1702 = vand.u32 %v1689, 2147483648
    %v1703 = vsel %vm1701, %v1702, %v1700
    %v1704 = vadd.f32 %v1696, 1e-06
    %v1705 = vadd.f32 %v1703, 1e-06
    %v1706 = vrcp.pop %v1704
    %v1707 = vrcp.pop %v1705
    %v1709 = vlaneseq
    %v1710 = vshrl.u32 %v1709, 7
    %v1711 = vsub.s32 0, %v1710
    %v1712 = vrot.slane %v1664, %v1711
    %v1714 = vmul.f32 %v1712, %v1706
    %v1715 = vmul.f32 %v1712, %v1707
    %v1716 = vmul.f32 %v1675, %v1714
    %v1717 = vmul.f32 %v1676, %v1715
    %v1719 = vlaneseq
    %v1720 = vshrl.u32 %v1719, 7
    %v1721 = vsub.s32 0, %v1720
    %v1722 = vrot.slane %v1665, %v1721
    %v1724 = vadd.f32 %v1716, %v1722
    %v1725 = vadd.f32 %v1717, %v1722
    %v1726 = vld [vmem:[%s13] sm:$0xff]
    %v1727 = vld [vmem:[%s13 + $0x8] sm:$0xff]
    %v1728 = vld [vmem:[%s13 + $0x10] sm:$0xff]
    %v1729 = vld [vmem:[%s13 + $0x18] sm:$0xff]
    %v1730 = vld [vmem:[%s14] sm:$0x1]
    %v1732 = vlaneseq
    %v1733 = vshrl.u32 %v1732, 7
    %v1734 = vsub.s32 0, %v1733
    %v1735 = vrot.slane %v1730, %v1734
    %v1738 = vsel %vm193, %v1724, 0
    %v1741 = vsel %vm193, %v1725, 0
    %1743 = vmatprep.subr.mxu0 0.0
    %1744 = vmatpush1.msra.mxu0 %v1726
    %1745 = vmatprep.subr.mxu0 0.0
    %1746 = vmatpush1.msra.mxu0 %v1727
    %1747 = vmatprep.subr.mxu0 0.0
    %1748 = vmatpush1.msra.mxu0 %v1728
    %1749 = vmatprep.subr.mxu0 0.0
    %1750 = vmatpush1.msra.mxu0 %v1729
    %1751 = vmatprep.subr.mxu0 0.0
    %1752 = vmatpush1.msra.mxu0 0.0
    %1753 = vmatprep.subr.mxu0 0.0
    %1754 = vmatpush1.msra.mxu0 0.0
    %1755 = vmatprep.subr.mxu0 0.0
    %1756 = vmatpush1.msra.mxu0 0.0
    %1757 = vmatprep.subr.mxu0 0.0
    %1758 = vmatpush1.msra.mxu0 0.0
    %1759 = vmatprep.subr.mxu0 0.0
    %1760 = vmatpush1.msra.mxu0 0.0
    %1761 = vmatprep.subr.mxu0 0.0
    %1762 = vmatpush1.msra.mxu0 0.0
    %1763 = vmatprep.subr.mxu0 0.0
    %1764 = vmatpush1.msra.mxu0 0.0
    %1765 = vmatprep.subr.mxu0 0.0
    %1766 = vmatpush1.msra.mxu0 0.0
    %1767 = vmatprep.subr.mxu0 0.0
    %1768 = vmatpush1.msra.mxu0 0.0
    %1769 = vmatprep.subr.mxu0 0.0
    %1770 = vmatpush1.msra.mxu0 0.0
    %1771 = vmatprep.subr.mxu0 0.0
    %1772 = vmatpush1.msra.mxu0 0.0
    %1773 = vmatprep.subr.mxu0 0.0
    %1774 = vmatpush1.msra.mxu0 0.0
    %1775 = vmatprep.subr.mxu0 0.0
    %1776 = vmatpush1.msra.mxu0 0.0
    %1777 = vmatprep.subr.mxu0 0.0
    %1778 = vmatpush1.msra.mxu0 0.0
    %1779 = vmatprep.subr.mxu0 0.0
    %1780 = vmatpush1.msra.mxu0 0.0
    %1781 = vmatprep.subr.mxu0 0.0
    %1782 = vmatpush1.msra.mxu0 0.0
    %1783 = vmatprep.subr.mxu0 0.0
    %1784 = vmatpush1.msra.mxu0 0.0
    %1785 = vmatprep.subr.mxu0 0.0
    %1786 = vmatpush1.msra.mxu0 0.0
    %1787 = vmatprep.subr.mxu0 0.0
    %1788 = vmatpush1.msra.mxu0 0.0
    %1789 = vmatprep.subr.mxu0 0.0
    %1790 = vmatpush1.msra.mxu0 0.0
    %1791 = vmatprep.subr.mxu0 0.0
    %1792 = vmatpush1.msra.mxu0 0.0
    %1793 = vmatprep.subr.mxu0 0.0
    %1794 = vmatpush1.msra.mxu0 0.0
    %1795 = vmatprep.subr.mxu0 0.0
    %1796 = vmatpush1.msra.mxu0 0.0
    %1797 = vmatprep.subr.mxu0 0.0
    %1798 = vmatpush1.msra.mxu0 0.0
    %1799 = vmatprep.subr.mxu0 0.0
    %1800 = vmatpush1.msra.mxu0 0.0
    %1801 = vmatprep.subr.mxu0 0.0
    %1802 = vmatpush1.msra.mxu0 0.0
    %1803 = vmatprep.subr.mxu0 0.0
    %1804 = vmatpush1.msra.mxu0 0.0
    %1805 = vmatprep.subr.mxu0 0.0
    %1806 = vmatpush1.msra.mxu0 0.0
    %1807 = vmatprep.mubr.f32.mxu0 0.0
    %1808 = vmatmul.mubr.f32.gmra.mrb[0].mxu0 %v1738
    %v1809 = vpop.f32.mrb[0].mxu0
    %v1810 = vadd.f32 %v1735, %v1809
    %v1811 = vpop.f32.mrb[0].mxu0
    %1812 = vmatprep.mubr.f32.mxu0 0.0
    %1813 = vmatmul.mubr.f32.gmra.mrb[0].mxu0 %v1741
    %v1814 = vpop.f32.mrb[0].mxu0
    %v1815 = vadd.f32 %v1735, %v1814
    %v1816 = vpop.f32.mrb[0].mxu0
    %1817 = vdwg.mxu0
    %v1818 = vmax.f32 %v1810, 0.0
    %v1819 = vmax.f32 %v1815, 0.0
    %v1820 = vld [vmem:[%s15] sm:$0xff]
    %v1821 = vld [vmem:[%s15 + $0x8] sm:$0xff]
    %v1822 = vld [vmem:[%s15 + $0x10] sm:$0xff]
    %v1823 = vld [vmem:[%s15 + $0x18] sm:$0xff]
    %v1824 = vld [vmem:[%s15 + $0x20] sm:$0xff]
    %v1825 = vld [vmem:[%s15 + $0x28] sm:$0xff]
    %v1826 = vld [vmem:[%s15 + $0x30] sm:$0xff]
    %v1827 = vld [vmem:[%s15 + $0x38] sm:$0xff]
    %v1828 = vld [vmem:[%s15 + $0x40] sm:$0xff]
    %v1829 = vld [vmem:[%s15 + $0x48] sm:$0xff]
    %v1830 = vld [vmem:[%s15 + $0x50] sm:$0xff]
    %v1831 = vld [vmem:[%s15 + $0x58] sm:$0xff]
    %v1832 = vld [vmem:[%s15 + $0x60] sm:$0xff]
    %v1833 = vld [vmem:[%s15 + $0x68] sm:$0xff]
    %v1834 = vld [vmem:[%s15 + $0x70] sm:$0xff]
    %v1835 = vld [vmem:[%s15 + $0x78] sm:$0xff]
    %v1836 = vld [vmem:[%s16] sm:$0x1]
    %v1838 = vlaneseq
    %v1839 = vshrl.u32 %v1838, 7
    %v1840 = vsub.s32 0, %v1839
    %v1841 = vrot.slane %v1836, %v1840
    %1843 = vmatprep.subr.mxu0 0.0
    %1844 = vmatpush1.msra.mxu0 %v1820
    %1845 = vmatprep.subr.mxu0 0.0
    %1846 = vmatpush1.msra.mxu0 %v1821
    %1847 = vmatprep.subr.mxu0 0.0
    %1848 = vmatpush1.msra.mxu0 %v1822
    %1849 = vmatprep.subr.mxu0 0.0
    %1850 = vmatpush1.msra.mxu0 %v1823
    %1851 = vmatprep.subr.mxu0 0.0
    %1852 = vmatpush1.msra.mxu0 %v1824
    %1853 = vmatprep.subr.mxu0 0.0
    %1854 = vmatpush1.msra.mxu0 %v1825
    %1855 = vmatprep.subr.mxu0 0.0
    %1856 = vmatpush1.msra.mxu0 %v1826
    %1857 = vmatprep.subr.mxu0 0.0
    %1858 = vmatpush1.msra.mxu0 %v1827
    %1859 = vmatprep.subr.mxu0 0.0
    %1860 = vmatpush1.msra.mxu0 %v1828
    %1861 = vmatprep.subr.mxu0 0.0
    %1862 = vmatpush1.msra.mxu0 %v1829
    %1863 = vmatprep.subr.mxu0 0.0
    %1864 = vmatpush1.msra.mxu0 %v1830
    %1865 = vmatprep.subr.mxu0 0.0
    %1866 = vmatpush1.msra.mxu0 %v1831
    %1867 = vmatprep.subr.mxu0 0.0
    %1868 = vmatpush1.msra.mxu0 %v1832
    %1869 = vmatprep.subr.mxu0 0.0
    %1870 = vmatpush1.msra.mxu0 %v1833
    %1871 = vmatprep.subr.mxu0 0.0
    %1872 = vmatpush1.msra.mxu0 %v1834
    %1873 = vmatprep.subr.mxu0 0.0
    %1874 = vmatpush1.msra.mxu0 %v1835
    %1875 = vmatprep.subr.mxu0 0.0
    %1876 = vmatpush1.msra.mxu0 0.0
    %1877 = vmatprep.subr.mxu0 0.0
    %1878 = vmatpush1.msra.mxu0 0.0
    %1879 = vmatprep.subr.mxu0 0.0
    %1880 = vmatpush1.msra.mxu0 0.0
    %1881 = vmatprep.subr.mxu0 0.0
    %1882 = vmatpush1.msra.mxu0 0.0
    %1883 = vmatprep.subr.mxu0 0.0
    %1884 = vmatpush1.msra.mxu0 0.0
    %1885 = vmatprep.subr.mxu0 0.0
    %1886 = vmatpush1.msra.mxu0 0.0
    %1887 = vmatprep.subr.mxu0 0.0
    %1888 = vmatpush1.msra.mxu0 0.0
    %1889 = vmatprep.subr.mxu0 0.0
    %1890 = vmatpush1.msra.mxu0 0.0
    %1891 = vmatprep.subr.mxu0 0.0
    %1892 = vmatpush1.msra.mxu0 0.0
    %1893 = vmatprep.subr.mxu0 0.0
    %1894 = vmatpush1.msra.mxu0 0.0
    %1895 = vmatprep.subr.mxu0 0.0
    %1896 = vmatpush1.msra.mxu0 0.0
    %1897 = vmatprep.subr.mxu0 0.0
    %1898 = vmatpush1.msra.mxu0 0.0
    %1899 = vmatprep.subr.mxu0 0.0
    %1900 = vmatpush1.msra.mxu0 0.0
    %1901 = vmatprep.subr.mxu0 0.0
    %1902 = vmatpush1.msra.mxu0 0.0
    %1903 = vmatprep.subr.mxu0 0.0
    %1904 = vmatpush1.msra.mxu0 0.0
    %1905 = vmatprep.subr.mxu0 0.0
    %1906 = vmatpush1.msra.mxu0 0.0
    %1907 = vmatprep.mubr.f32.mxu0 0.0
    %1908 = vmatmul.mubr.f32.gmra.mrb[0].mxu0 %v1818
    %v1909 = vpop.f32.mrb[0].mxu0
    %v1910 = vadd.f32 %v1841, %v1909
    %v1911 = vpop.f32.mrb[0].mxu0
    %1912 = vmatprep.mubr.f32.mxu0 0.0
    %1913 = vmatmul.mubr.f32.gmra.mrb[0].mxu0 %v1819
    %v1914 = vpop.f32.mrb[0].mxu0
    %v1915 = vadd.f32 %v1841, %v1914
    %v1916 = vpop.f32.mrb[0].mxu0
    %1917 = vdwg.mxu0
    %v1918 = vadd.f32 %v1724, %v1910
    %v1919 = vadd.f32 %v1725, %v1915
    %v1920 = vld [vmem:[%s11] sm:$0x1]
    %v1921 = vld [vmem:[%s12] sm:$0x1]
    %v1922 = vsel %vm193, %v1918, 0.0
    %1923 = vadd.xlane.f32.xlu0 %v1922
    %v1924 = vpop.xlane.xlu0 %1923
    %v1925 = vsel %vm193, %v1919, 0.0
    %1926 = vadd.xlane.f32.xlu0 %v1925
    %v1927 = vpop.xlane.xlu0 %1926
    %v1928 = vmul.f32 %v1924, %v1672
    %v1929 = vmul.f32 %v1927, %v1672
    %v1930 = vsub.f32 %v1918, %v1928
    %v1931 = vsub.f32 %v1919, %v1929
    %v1932 = vmul.f32 %v1930, %v1930
    %v1933 = vmul.f32 %v1931, %v1931
    %v1934 = vsel %vm193, %v1932, 0.0
    %1935 = vadd.xlane.f32.xlu0 %v1934
    %v1936 = vpop.xlane.xlu0 %1935
    %v1937 = vsel %vm193, %v1933, 0.0
    %1938 = vadd.xlane.f32.xlu0 %v1937
    %v1939 = vpop.xlane.xlu0 %1938
    %v1940 = vmul.f32 %v1936, %v1685
    %v1941 = vmul.f32 %v1939, %v1685
    %v1942 = vadd.f32 %v1940, 1e-06
    %v1943 = vadd.f32 %v1941, 1e-06
    %v1944 = vrsqrt.pop %v1942
    %v1945 = vmul.f32 %v1942, %v1944
    %vm1946 = vcmp.eq.f32.partialorder %v1942, inf
    %v1947 = vsel %vm1946, %v1942, %v1945
    %vm1948 = vcmp.eq.f32.partialorder %v1942, 0.0
    %v1949 = vand.u32 %v1942, 2147483648
    %v1950 = vsel %vm1948, %v1949, %v1947
    %v1951 = vrsqrt.pop %v1943
    %v1952 = vmul.f32 %v1943, %v1951
    %vm1953 = vcmp.eq.f32.partialorder %v1943, inf
    %v1954 = vsel %vm1953, %v1943, %v1952
    %vm1955 = vcmp.eq.f32.partialorder %v1943, 0.0
    %v1956 = vand.u32 %v1943, 2147483648
    %v1957 = vsel %vm1955, %v1956, %v1954
    %v1958 = vadd.f32 %v1950, 1e-06
    %v1959 = vadd.f32 %v1957, 1e-06
    %v1960 = vrcp.pop %v1958
    %v1961 = vrcp.pop %v1959
    %v1963 = vlaneseq
    %v1964 = vshrl.u32 %v1963, 7
    %v1965 = vsub.s32 0, %v1964
    %v1966 = vrot.slane %v1920, %v1965
    %v1968 = vmul.f32 %v1966, %v1960
    %v1969 = vmul.f32 %v1966, %v1961
    %v1970 = vmul.f32 %v1930, %v1968
    %v1971 = vmul.f32 %v1931, %v1969
    %v1973 = vlaneseq
    %v1974 = vshrl.u32 %v1973, 7
    %v1975 = vsub.s32 0, %v1974
    %v1976 = vrot.slane %v1921, %v1975
    %v1978 = vadd.f32 %v1970, %v1976
    %v1979 = vadd.f32 %v1971, %v1976
    %v1980 = vld [vmem:[%s3] sm:$0xff]
    %v1981 = vld [vmem:[%s3 + $0x8] sm:$0xff]
    %1983 = vset.pattern.permute.xlu0 0
    %1984 = vperm.xlu0 %1983, %v1980
    %v1985 = vpop.permute.xlu0 %1984
    %1988 = vset.pattern.permute.xlu0 0
    %1989 = vperm.xlu0 %1988, %v1981
    %v1990 = vpop.permute.xlu0 %1989
    %v1992 = vmul.f32 %v1985, %v1978
    %v1993 = vmul.f32 %v1990, %v1979
    %1994 = vst.msk [vmem:[#allocation2] sm:$0xff] %vm193, %v1992
    %1995 = vst.msk [vmem:[#allocation2 + $0x8] sm:$0xff] %vm193, %v1993
    // Predicated region
    $region70: #{tpu_custom_call.1} parent=1 // pred_check
      _
    $region71: #{tpu_custom_call.1} parent=1 // pred_check_branch
      %1997 = sbr.rel (0) target = $region73
    $region72: #{tpu_custom_call.1} parent=1 // pred_region
      %s1999 = ssub.s32 256, 256
      %2000 = vsyncadd [#allocation3], %s1999
      %s2001 = sshll.u32 [#allocation2], 4
      %s2002 = int_to_ptr.vmem [resolvable:$true] %s2001
      %2007 = dma.vmem_to_hbm [thread:$0]  %s2002, 256, %s17, [#allocation3], 128, 128, 8
    $region73: #{tpu_custom_call.1} parent=1 // pred_fallthru
      _
    // Predicated region
    $region74: #{tpu_custom_call.1} parent=1 // pred_check
      _
    $region75: #{tpu_custom_call.1} parent=1 // pred_check_branch
      %2009 = sbr.rel (0) target = $region77
    $region76: #{tpu_custom_call.1} parent=1 // pred_region
      %2010 = dma.done [#allocation3], 256
    $region77: #{tpu_custom_call.1} parent=1 // pred_fallthru
      _
    %2011 = vsyncpa [#allocation3], 1

</llo_original>
